<compile_context>
chip_gen: v5e
topology: v5e:2x2
jax: 0.10.0
libtpu: 0.0.40
codegen_flags: <defaults>
</compile_context>

<pallas_src>
import functools
import math

import jax
import jax.numpy as jnp
import numpy as np
from jax.experimental import pallas as pl
from jax.experimental.pallas import tpu as pltpu


def _silu(x):
    return x * jax.nn.sigmoid(x)


def _edge_attention_kernel(
    feat_ref, coords_ref, mask_ref,
    wq_ref, wk_ref, wv_ref,
    centers_ref, widths_ref,
    w1qb_ref, w1kb_ref, w1rr_ref, w1dr_ref, b1r_ref,
    w2b_ref, b2r_ref, w3s_ref, b3_ref,
    wg1b_ref, bg1r_ref, wg2b_ref, bg2_ref,
    wo_ref, bo_ref, gamma_ref, beta_ref,
    rep_ref, til_ref, rept_ref,
    out_feat_ref, out_coords_ref,
    *, num_heads, cutoff,
):
    E, H = feat_ref.shape
    hd = H // num_heads
    EE = E * E
    inv_nh = 1.0 / num_heads
    f32 = jnp.float32

    def mm(a, b):
        return jnp.dot(a, b, preferred_element_type=f32)

    x = feat_ref[...]              # [E, H]
    coords = coords_ref[...]       # [E, 3]
    mask = mask_ref[...]           # [E, E]  (query-major, 0 / -inf)
    rep = rep_ref[...]             # [EE, E]  row i*E+j selects query i
    til = til_ref[...]             # [EE, E]  row i*E+j selects key j
    rept = rept_ref[...]           # [E, EE]  un-flatten operator

    # ---- projections (lane-dense MXU matmuls) -------------------------------
    q = mm(x, wq_ref[...])         # [E, H]
    k = mm(x, wk_ref[...])
    v = mm(x, wv_ref[...])

    # first attention-MLP layer q/k contributions for ALL heads at once
    # (block-diagonal packed weights -> [E, NH*H], NH*H == 128 lanes)
    qc = mm(q, w1qb_ref[...])
    kc = mm(k, w1kb_ref[...])

    # per-head coordinate gates for ALL heads at once (block-diag packed gate MLP)
    gh = _silu(mm(v, wg1b_ref[...]) + bg1r_ref[...])                     # [E, NH*H]
    gates = jax.nn.sigmoid(mm(gh, wg2b_ref[...]) + bg2_ref[...])         # [E, NH]

    # ---- batched pairwise geometry in flat layout (row p = i*E + j) ---------
    cq = mm(rep, coords)           # [EE, 3]  coords of query i
    ck = mm(til, coords)           # [EE, 3]  coords of key j
    cd = cq - ck
    dist = jnp.sqrt(jnp.sum(cd * cd, axis=-1, keepdims=True)) + 1e-8     # [EE, 1]
    dist = jnp.clip(dist, 1e-8, 1e8)
    dotp = jnp.clip(jnp.sum(cq * ck, axis=-1, keepdims=True), -1e8, 1e8)  # [EE, 1]
    rbf = jnp.exp(-widths_ref[...] * (dist - centers_ref[...]) ** 2)     # [EE, R]
    rbf = rbf * (dist <= cutoff).astype(f32)

    # ---- pairwise attention MLP, all heads & all pairs in one matmul chain --
    base = mm(rbf, w1rr_ref[...]) + dotp * w1dr_ref[...] + b1r_ref[...]  # [EE, NH*H]
    h1 = _silu(mm(rep, qc) + mm(til, kc) + base)                         # [EE, NH*H]
    h2 = _silu(mm(h1, w2b_ref[...]) + b2r_ref[...])                      # [EE, NH*H]
    sc = mm(h2, w3s_ref[...]) + b3_ref[...]                              # [EE, NH]

    # ---- per-head softmax + aggregation (short unrolled loop over heads) ----
    upd_list = []
    coords_new = coords
    for h in range(num_heads):
        s_col = sc[:, h:h + 1]                                            # [EE, 1]
        # un-flatten to lane-dense [E_q, E_k] via constant matmul
        scores = mm(rept, s_col * til) + mask                             # [E, E]
        # NOTE: -inf mask entries become -1e9 here (same as the reference clamp);
        # exp(-1e9 - max) underflows to exactly 0 in f32.
        scores = jnp.clip(scores, -1e9, 1e9)

        m = jnp.max(scores, axis=-1, keepdims=True)                       # [E, 1]
        ex = jnp.exp(scores - m)
        den = jnp.sum(ex, axis=-1, keepdims=True)
        attn = ex * pl.reciprocal(den, approx=True)
        attn = jnp.where(jnp.isnan(attn), 0.0, attn)   # mirrors nan_to_num (finite case)

        # invariant feature update: attn @ v_h on the MXU
        v_h = v[:, h * hd:(h + 1) * hd]
        upd_list.append(mm(attn, v_h))                                    # [E, hd]

        # equivariant update: sum_j a_ij (c_i - c_j) = c_i*rowsum(a) - (a @ c)_i
        rowsum = jnp.sum(attn, axis=-1, keepdims=True)                    # [E, 1]
        agg = mm(attn, coords)                                            # [E, 3]
        coords_new = coords_new + gates[:, h:h + 1] * (coords * rowsum - agg) * inv_nh

    upd = jnp.concatenate(upd_list, axis=-1)                              # [E, H]
    y = mm(upd, wo_ref[...]) + bo_ref[...]

    z = x + y
    mu = jnp.mean(z, axis=-1, keepdims=True)
    var = jnp.mean((z - mu) ** 2, axis=-1, keepdims=True)
    out = (z - mu) * jax.lax.rsqrt(var + 1e-5) * gamma_ref[...] + beta_ref[...]

    # coalesced stores (one per output)
    out_feat_ref[...] = out
    out_coords_ref[...] = coords_new


def edge_attention_forward(params, edge_features, edge_coords, edge_mask,
                           edge_index=None, *, num_heads, cutoff):
    # edge_index is accepted for API parity with the torch module; the reference
    # forward never uses it.
    del edge_index
    E, H = edge_features.shape
    hd = H // num_heads
    R = params["centers"].shape[0]
    f32 = jnp.float32

    # split attention_mlp layer-1 weight by the concat order [q | k | rbf | dot]
    w1 = params["w1"]
    w1q, w1k = w1[:hd], w1[hd:2 * hd]
    w1r, w1d = w1[2 * hd:2 * hd + R], w1[2 * hd + R:]

    def blkdiag(m, n):
        return jax.scipy.linalg.block_diag(*([m] * n))

    # --- host-side weight packing: every per-head matmul becomes one big matmul ---
    w1q_blk = blkdiag(w1q, num_heads)                       # [H, NH*H]
    w1k_blk = blkdiag(w1k, num_heads)                       # [H, NH*H]
    w1r_rep = jnp.tile(w1r, (1, num_heads))                 # [R, NH*H]
    w1d_rep = jnp.tile(w1d.reshape(1, H), (1, num_heads))   # [1, NH*H]
    b1_rep = jnp.tile(params["b1"].reshape(1, H), (1, num_heads))
    w2_blk = blkdiag(params["w2"], num_heads)               # [NH*H, NH*H]
    b2_rep = jnp.tile(params["b2"].reshape(1, H), (1, num_heads))
    # head-h score column reads only head-h's hidden block
    w3_sel = blkdiag_cols = jax.scipy.linalg.block_diag(
        *[params["w3"][:, h:h + 1] for h in range(num_heads)])            # [NH*H, NH]
    b3_row = params["b3"].reshape(1, num_heads)
    wg1_blk = blkdiag(params["wg1"], num_heads)             # [H, NH*H]
    bg1_rep = jnp.tile(params["bg1"].reshape(1, H), (1, num_heads))
    wg2_blk = blkdiag(params["wg2"], num_heads)             # [NH*H, NH]
    bg2 = params["bg2"].reshape(1, 1)

    # constant repeat/tile operators: row p = i*E + j selects query i / key j
    idx = np.arange(E * E)
    rep_np = np.zeros((E * E, E), np.float32)
    til_np = np.zeros((E * E, E), np.float32)
    rep_np[idx, idx // E] = 1.0
    til_np[idx, idx % E] = 1.0
    rep = jnp.asarray(rep_np)
    til = jnp.asarray(til_np)
    rept = jnp.asarray(rep_np.T)

    args = (
        edge_features.astype(f32),
        edge_coords.astype(f32),
        edge_mask.astype(f32),
        params["wq"], params["wk"], params["wv"],
        params["centers"].reshape(1, R), params["widths"].reshape(1, R),
        w1q_blk, w1k_blk, w1r_rep, w1d_rep, b1_rep,
        w2_blk, b2_rep, w3_sel, b3_row,
        wg1_blk, bg1_rep, wg2_blk, bg2,
        params["wo"], params["bo"].reshape(1, H),
        params["gamma"].reshape(1, H), params["beta"].reshape(1, H),
        rep, til, rept,
    )

    in_specs = [pl.BlockSpec(memory_space=pltpu.MemorySpace.VMEM) for _ in args]

    kernel = functools.partial(_edge_attention_kernel, num_heads=num_heads,
                               cutoff=float(cutoff))
    out_feat, out_coords = pl.pallas_call(
        kernel,
        out_shape=(jax.ShapeDtypeStruct((E, H), f32),
                   jax.ShapeDtypeStruct((E, 3), f32)),
        in_specs=in_specs,
        out_specs=(pl.BlockSpec(memory_space=pltpu.MemorySpace.VMEM),
                   pl.BlockSpec(memory_space=pltpu.MemorySpace.VMEM)),
    )(*args)
    return out_feat, out_coords


def reference_forward(params, edge_features, edge_coords, edge_mask, *, num_heads, cutoff):
    """Pure-JAX mirror of the torch forward (for a correctness check)."""
    E, H = edge_features.shape
    hd = H // num_heads
    hp = functools.partial(jnp.dot, precision=jax.lax.Precision.HIGHEST)
    silu = lambda t: t * jax.nn.sigmoid(t)

    q = hp(edge_features, params["wq"]).reshape(E, num_heads, hd)
    k = hp(edge_features, params["wk"]).reshape(E, num_heads, hd)
    v = hp(edge_features, params["wv"]).reshape(E, num_heads, hd)

    cdiff = edge_coords[:, None, :] - edge_coords[None, :, :]
    dist = jnp.sqrt(jnp.sum(cdiff ** 2, axis=-1)) + 1e-8
    dist = jnp.clip(dist, 1e-8, 1e8)
    dotp = jnp.clip(jnp.sum(edge_coords[:, None, :] * edge_coords[None, :, :], axis=-1),
                    -1e8, 1e8)
    rbf = jnp.exp(-params["widths"] * (dist[..., None] - params["centers"]) ** 2)
    rbf = rbf * (dist[..., None] <= cutoff).astype(jnp.float32)

    attn_list = []
    for h in range(num_heads):
        q_h, k_h = q[:, h, :], k[:, h, :]
        ai = jnp.concatenate([
            jnp.broadcast_to(q_h[:, None, :], (E, E, hd)),
            jnp.broadcast_to(k_h[None, :, :], (E, E, hd)),
            rbf, dotp[..., None]], axis=-1)
        h1 = silu(hp(ai, params["w1"]) + params["b1"])
        h2 = silu(hp(h1, params["w2"]) + params["b2"])
        sc = hp(h2, params["w3"]) + params["b3"]
        sc = sc[:, :, h] + edge_mask
        sc = jnp.clip(sc, -1e9, 1e9)
        aw = jax.nn.softmax(sc, axis=-1)
        aw = jnp.nan_to_num(aw, nan=0.0, posinf=1.0, neginf=0.0)
        attn_list.append(aw)

    upd = jnp.concatenate([hp(attn_list[h], v[:, h, :]) for h in range(num_heads)], axis=-1)

    updated_coords = edge_coords
    for h in range(num_heads):
        v_h = v[:, h, :]
        gates = jax.nn.sigmoid(
            hp(silu(hp(v_h, params["wg1"]) + params["bg1"]), params["wg2"]) + params["bg2"])
        w = attn_list[h][:, :, None] * gates[:, None, :] * cdiff
        updated_coords = updated_coords + jnp.sum(w, axis=1) / num_heads

    y = hp(upd, params["wo"]) + params["bo"]
    z = edge_features + y
    mu = jnp.mean(z, axis=-1, keepdims=True)
    var = jnp.mean((z - mu) ** 2, axis=-1, keepdims=True)
    out = (z - mu) / jnp.sqrt(var + 1e-5) * params["gamma"] + params["beta"]
    return out, updated_coords


if __name__ == "__main__":
    E, H, NH, R = 8, 32, 4, 16
    CUTOFF = 10.0
    hd = H // NH
    F = 2 * hd + R + 1

    key = jax.random.PRNGKey(0)
    ks = jax.random.split(key, 24)

    def xavier(kk, fan_in, fan_out):
        a = math.sqrt(6.0 / (fan_in + fan_out))
        return jax.random.uniform(kk, (fan_in, fan_out), jnp.float32, -a, a)

    params = dict(
        wq=xavier(ks[0], H, H), wk=xavier(ks[1], H, H), wv=xavier(ks[2], H, H),
        w1=xavier(ks[3], F, H), b1=0.1 * jax.random.normal(ks[4], (H,), jnp.float32),
        w2=xavier(ks[5], H, H), b2=0.1 * jax.random.normal(ks[6], (H,), jnp.float32),
        w3=xavier(ks[7], H, NH), b3=0.1 * jax.random.normal(ks[8], (NH,), jnp.float32),
        wg1=xavier(ks[9], hd, H), bg1=0.1 * jax.random.normal(ks[10], (H,), jnp.float32),
        wg2=xavier(ks[11], H, 1), bg2=0.1 * jax.random.normal(ks[12], (1,), jnp.float32),
        wo=xavier(ks[13], H, H), bo=0.1 * jax.random.normal(ks[14], (H,), jnp.float32),
        gamma=jnp.ones((H,), jnp.float32) + 0.05 * jax.random.normal(ks[15], (H,), jnp.float32),
        beta=0.05 * jax.random.normal(ks[16], (H,), jnp.float32),
        centers=jnp.linspace(0.0, CUTOFF, R).astype(jnp.float32),
        widths=0.5 * jnp.ones((R,), jnp.float32),
    )

    edge_features = jax.random.normal(ks[17], (E, H), jnp.float32)
    edge_coords = 1.5 * jax.random.normal(ks[18], (E, 3), jnp.float32)
    edge_mask = jnp.where(jax.random.uniform(ks[19], (E, E)) < 0.25,
                          -jnp.inf, 0.0).astype(jnp.float32)
    edge_index = jax.random.randint(ks[20], (2, E), 0, E)   # unused by the forward math

    out_feat, out_coords = edge_attention_forward(
        params, edge_features, edge_coords, edge_mask, edge_index,
        num_heads=NH, cutoff=CUTOFF)
    jax.block_until_ready((out_feat, out_coords))

    ref_feat, ref_coords = reference_forward(
        params, edge_features, edge_coords, edge_mask, num_heads=NH, cutoff=CUTOFF)

    assert out_feat.shape == (E, H) and out_coords.shape == (E, 3)
    assert np.all(np.isfinite(np.asarray(out_feat)))
    assert np.all(np.isfinite(np.asarray(out_coords)))
    np.testing.assert_allclose(np.asarray(out_feat), np.asarray(ref_feat), rtol=2e-2, atol=2e-2)
    np.testing.assert_allclose(np.asarray(out_coords), np.asarray(ref_coords), rtol=2e-2, atol=2e-2)
    print("KERNEL_OK")
</pallas_src>

<mosaic_0001>
module attributes {stable_mosaic.version = 11 : i64} {
  func.func @_edge_attention_kernel(%arg0: memref<8x32xf32, #tpu.memory_space<vmem>>, %arg1: memref<8x3xf32, #tpu.memory_space<vmem>>, %arg2: memref<8x8xf32, #tpu.memory_space<vmem>>, %arg3: memref<32x32xf32, #tpu.memory_space<vmem>>, %arg4: memref<32x32xf32, #tpu.memory_space<vmem>>, %arg5: memref<32x32xf32, #tpu.memory_space<vmem>>, %arg6: memref<1x16xf32, #tpu.memory_space<vmem>>, %arg7: memref<1x16xf32, #tpu.memory_space<vmem>>, %arg8: memref<32x128xf32, #tpu.memory_space<vmem>>, %arg9: memref<32x128xf32, #tpu.memory_space<vmem>>, %arg10: memref<16x128xf32, #tpu.memory_space<vmem>>, %arg11: memref<1x128xf32, #tpu.memory_space<vmem>>, %arg12: memref<1x128xf32, #tpu.memory_space<vmem>>, %arg13: memref<128x128xf32, #tpu.memory_space<vmem>>, %arg14: memref<1x128xf32, #tpu.memory_space<vmem>>, %arg15: memref<128x4xf32, #tpu.memory_space<vmem>>, %arg16: memref<1x4xf32, #tpu.memory_space<vmem>>, %arg17: memref<32x128xf32, #tpu.memory_space<vmem>>, %arg18: memref<1x128xf32, #tpu.memory_space<vmem>>, %arg19: memref<128x4xf32, #tpu.memory_space<vmem>>, %arg20: memref<1x1xf32, #tpu.memory_space<vmem>>, %arg21: memref<32x32xf32, #tpu.memory_space<vmem>>, %arg22: memref<1x32xf32, #tpu.memory_space<vmem>>, %arg23: memref<1x32xf32, #tpu.memory_space<vmem>>, %arg24: memref<1x32xf32, #tpu.memory_space<vmem>>, %arg25: memref<64x8xf32, #tpu.memory_space<vmem>>, %arg26: memref<64x8xf32, #tpu.memory_space<vmem>>, %arg27: memref<8x64xf32, #tpu.memory_space<vmem>>, %arg28: memref<8x32xf32, #tpu.memory_space<vmem>>, %arg29: memref<8x3xf32, #tpu.memory_space<vmem>>) attributes {dimension_semantics = [], scalar_prefetch = 0 : i64, scratch_operands = 0 : i64, tpu.core_type = #tpu.core_type<tc>} {
    %c0 = arith.constant 0 : index
    %c0_0 = arith.constant 0 : index
    %0 = vector.load %arg0[%c0, %c0_0] : memref<8x32xf32, #tpu.memory_space<vmem>>, vector<8x32xf32>
    %c0_1 = arith.constant 0 : index
    %c0_2 = arith.constant 0 : index
    %1 = vector.load %arg1[%c0_1, %c0_2] : memref<8x3xf32, #tpu.memory_space<vmem>>, vector<8x3xf32>
    %c0_3 = arith.constant 0 : index
    %c0_4 = arith.constant 0 : index
    %2 = vector.load %arg2[%c0_3, %c0_4] : memref<8x8xf32, #tpu.memory_space<vmem>>, vector<8x8xf32>
    %c0_5 = arith.constant 0 : index
    %c0_6 = arith.constant 0 : index
    %3 = vector.load %arg25[%c0_5, %c0_6] : memref<64x8xf32, #tpu.memory_space<vmem>>, vector<64x8xf32>
    %c0_7 = arith.constant 0 : index
    %c0_8 = arith.constant 0 : index
    %4 = vector.load %arg26[%c0_7, %c0_8] : memref<64x8xf32, #tpu.memory_space<vmem>>, vector<64x8xf32>
    %c0_9 = arith.constant 0 : index
    %c0_10 = arith.constant 0 : index
    %5 = vector.load %arg27[%c0_9, %c0_10] : memref<8x64xf32, #tpu.memory_space<vmem>>, vector<8x64xf32>
    %c0_11 = arith.constant 0 : index
    %c0_12 = arith.constant 0 : index
    %6 = vector.load %arg3[%c0_11, %c0_12] : memref<32x32xf32, #tpu.memory_space<vmem>>, vector<32x32xf32>
    %cst = arith.constant dense<0.000000e+00> : vector<8x32xf32>
    %7 = tpu.matmul %0, %6, %cst {dimension_numbers = #tpu.dot_dimension_numbers<[1], [0], [0], [1], [0, 0, 1, 1], [], []>} : vector<8x32xf32>, vector<32x32xf32>, vector<8x32xf32> -> vector<8x32xf32>
    %c0_13 = arith.constant 0 : index
    %c0_14 = arith.constant 0 : index
    %8 = vector.load %arg4[%c0_13, %c0_14] : memref<32x32xf32, #tpu.memory_space<vmem>>, vector<32x32xf32>
    %cst_15 = arith.constant dense<0.000000e+00> : vector<8x32xf32>
    %9 = tpu.matmul %0, %8, %cst_15 {dimension_numbers = #tpu.dot_dimension_numbers<[1], [0], [0], [1], [0, 0, 1, 1], [], []>} : vector<8x32xf32>, vector<32x32xf32>, vector<8x32xf32> -> vector<8x32xf32>
    %c0_16 = arith.constant 0 : index
    %c0_17 = arith.constant 0 : index
    %10 = vector.load %arg5[%c0_16, %c0_17] : memref<32x32xf32, #tpu.memory_space<vmem>>, vector<32x32xf32>
    %cst_18 = arith.constant dense<0.000000e+00> : vector<8x32xf32>
    %11 = tpu.matmul %0, %10, %cst_18 {dimension_numbers = #tpu.dot_dimension_numbers<[1], [0], [0], [1], [0, 0, 1, 1], [], []>} : vector<8x32xf32>, vector<32x32xf32>, vector<8x32xf32> -> vector<8x32xf32>
    %c0_19 = arith.constant 0 : index
    %c0_20 = arith.constant 0 : index
    %12 = vector.load %arg8[%c0_19, %c0_20] : memref<32x128xf32, #tpu.memory_space<vmem>>, vector<32x128xf32>
    %cst_21 = arith.constant dense<0.000000e+00> : vector<8x128xf32>
    %13 = tpu.matmul %7, %12, %cst_21 {dimension_numbers = #tpu.dot_dimension_numbers<[1], [0], [0], [1], [0, 0, 1, 1], [], []>} : vector<8x32xf32>, vector<32x128xf32>, vector<8x128xf32> -> vector<8x128xf32>
    %c0_22 = arith.constant 0 : index
    %c0_23 = arith.constant 0 : index
    %14 = vector.load %arg9[%c0_22, %c0_23] : memref<32x128xf32, #tpu.memory_space<vmem>>, vector<32x128xf32>
    %cst_24 = arith.constant dense<0.000000e+00> : vector<8x128xf32>
    %15 = tpu.matmul %9, %14, %cst_24 {dimension_numbers = #tpu.dot_dimension_numbers<[1], [0], [0], [1], [0, 0, 1, 1], [], []>} : vector<8x32xf32>, vector<32x128xf32>, vector<8x128xf32> -> vector<8x128xf32>
    %c0_25 = arith.constant 0 : index
    %c0_26 = arith.constant 0 : index
    %16 = vector.load %arg17[%c0_25, %c0_26] : memref<32x128xf32, #tpu.memory_space<vmem>>, vector<32x128xf32>
    %cst_27 = arith.constant dense<0.000000e+00> : vector<8x128xf32>
    %17 = tpu.matmul %11, %16, %cst_27 {dimension_numbers = #tpu.dot_dimension_numbers<[1], [0], [0], [1], [0, 0, 1, 1], [], []>} : vector<8x32xf32>, vector<32x128xf32>, vector<8x128xf32> -> vector<8x128xf32>
    %c0_28 = arith.constant 0 : index
    %c0_29 = arith.constant 0 : index
    %18 = vector.load %arg18[%c0_28, %c0_29] : memref<1x128xf32, #tpu.memory_space<vmem>>, vector<1x128xf32>
    %19 = vector.broadcast %18 : vector<1x128xf32> to vector<8x128xf32>
    %20 = arith.addf %17, %19 : vector<8x128xf32>
    %21 = arith.negf %20 : vector<8x128xf32>
    %22 = math.exp %21 : vector<8x128xf32>
    %cst_30 = arith.constant 1.000000e+00 : f32
    %23 = vector.broadcast %cst_30 : f32 to vector<8x128xf32>
    %24 = arith.addf %23, %22 : vector<8x128xf32>
    %25 = arith.divf %23, %24 : vector<8x128xf32>
    %26 = arith.mulf %20, %25 : vector<8x128xf32>
    %c0_31 = arith.constant 0 : index
    %c0_32 = arith.constant 0 : index
    %27 = vector.load %arg19[%c0_31, %c0_32] : memref<128x4xf32, #tpu.memory_space<vmem>>, vector<128x4xf32>
    %cst_33 = arith.constant dense<0.000000e+00> : vector<8x4xf32>
    %28 = tpu.matmul %26, %27, %cst_33 {dimension_numbers = #tpu.dot_dimension_numbers<[1], [0], [0], [1], [0, 0, 1, 1], [], []>} : vector<8x128xf32>, vector<128x4xf32>, vector<8x4xf32> -> vector<8x4xf32>
    %c0_34 = arith.constant 0 : index
    %c0_35 = arith.constant 0 : index
    %29 = vector.load %arg20[%c0_34, %c0_35] : memref<1x1xf32, #tpu.memory_space<vmem>>, vector<1x1xf32>
    %30 = vector.broadcast %29 : vector<1x1xf32> to vector<8x4xf32>
    %31 = arith.addf %28, %30 : vector<8x4xf32>
    %32 = arith.negf %31 : vector<8x4xf32>
    %33 = math.exp %32 : vector<8x4xf32>
    %cst_36 = arith.constant 1.000000e+00 : f32
    %34 = vector.broadcast %cst_36 : f32 to vector<8x4xf32>
    %35 = arith.addf %34, %33 : vector<8x4xf32>
    %36 = arith.divf %34, %35 : vector<8x4xf32>
    %cst_37 = arith.constant dense<0.000000e+00> : vector<64x3xf32>
    %37 = tpu.matmul %3, %1, %cst_37 {dimension_numbers = #tpu.dot_dimension_numbers<[1], [0], [0], [1], [0, 0, 1, 1], [], []>} : vector<64x8xf32>, vector<8x3xf32>, vector<64x3xf32> -> vector<64x3xf32>
    %cst_38 = arith.constant dense<0.000000e+00> : vector<64x3xf32>
    %38 = tpu.matmul %4, %1, %cst_38 {dimension_numbers = #tpu.dot_dimension_numbers<[1], [0], [0], [1], [0, 0, 1, 1], [], []>} : vector<64x8xf32>, vector<8x3xf32>, vector<64x3xf32> -> vector<64x3xf32>
    %39 = arith.subf %37, %38 : vector<64x3xf32>
    %40 = arith.mulf %39, %39 : vector<64x3xf32>
    %cst_39 = arith.constant dense<0.000000e+00> : vector<64xf32>
    %41 = vector.multi_reduction <add>, %40, %cst_39 [1] : vector<64x3xf32> to vector<64xf32>
    %42 = vector.shape_cast %41 : vector<64xf32> to vector<64x1xf32>
    %43 = math.sqrt %42 : vector<64x1xf32>
    %cst_40 = arith.constant 9.99999993E-9 : f32
    %44 = vector.broadcast %cst_40 : f32 to vector<64x1xf32>
    %45 = arith.addf %43, %44 : vector<64x1xf32>
    %cst_41 = arith.constant 9.99999993E-9 : f32
    %cst_42 = arith.constant 1.000000e+08 : f32
    %46 = vector.broadcast %cst_41 : f32 to vector<64x1xf32>
    %47 = arith.maximumf %46, %45 : vector<64x1xf32>
    %48 = vector.broadcast %cst_42 : f32 to vector<64x1xf32>
    %49 = arith.minimumf %48, %47 : vector<64x1xf32>
    %50 = arith.mulf %37, %38 : vector<64x3xf32>
    %cst_43 = arith.constant dense<0.000000e+00> : vector<64xf32>
    %51 = vector.multi_reduction <add>, %50, %cst_43 [1] : vector<64x3xf32> to vector<64xf32>
    %52 = vector.shape_cast %51 : vector<64xf32> to vector<64x1xf32>
    %cst_44 = arith.constant -1.000000e+08 : f32
    %cst_45 = arith.constant 1.000000e+08 : f32
    %53 = vector.broadcast %cst_44 : f32 to vector<64x1xf32>
    %54 = arith.maximumf %53, %52 : vector<64x1xf32>
    %55 = vector.broadcast %cst_45 : f32 to vector<64x1xf32>
    %56 = arith.minimumf %55, %54 : vector<64x1xf32>
    %c0_46 = arith.constant 0 : index
    %c0_47 = arith.constant 0 : index
    %57 = vector.load %arg7[%c0_46, %c0_47] : memref<1x16xf32, #tpu.memory_space<vmem>>, vector<1x16xf32>
    %cst_48 = arith.constant 0.000000e+00 : f32
    %58 = vector.broadcast %cst_48 : f32 to vector<1x16xf32>
    %59 = arith.subf %58, %57 : vector<1x16xf32>
    %c0_49 = arith.constant 0 : index
    %c0_50 = arith.constant 0 : index
    %60 = vector.load %arg6[%c0_49, %c0_50] : memref<1x16xf32, #tpu.memory_space<vmem>>, vector<1x16xf32>
    %61 = vector.broadcast %49 : vector<64x1xf32> to vector<64x16xf32>
    %62 = vector.broadcast %60 : vector<1x16xf32> to vector<64x16xf32>
    %63 = arith.subf %61, %62 : vector<64x16xf32>
    %64 = arith.mulf %63, %63 : vector<64x16xf32>
    %65 = vector.broadcast %59 : vector<1x16xf32> to vector<64x16xf32>
    %66 = arith.mulf %65, %64 : vector<64x16xf32>
    %67 = math.exp %66 : vector<64x16xf32>
    %cst_51 = arith.constant 1.000000e+01 : f32
    %68 = vector.broadcast %cst_51 : f32 to vector<64x1xf32>
    %69 = arith.cmpf ole, %49, %68 : vector<64x1xf32>
    %70 = arith.extui %69 : vector<64x1xi1> to vector<64x1xi32>
    %71 = arith.sitofp %70 : vector<64x1xi32> to vector<64x1xf32>
    %72 = vector.broadcast %71 : vector<64x1xf32> to vector<64x16xf32>
    %73 = arith.mulf %67, %72 : vector<64x16xf32>
    %c0_52 = arith.constant 0 : index
    %c0_53 = arith.constant 0 : index
    %74 = vector.load %arg10[%c0_52, %c0_53] : memref<16x128xf32, #tpu.memory_space<vmem>>, vector<16x128xf32>
    %cst_54 = arith.constant dense<0.000000e+00> : vector<64x128xf32>
    %75 = tpu.matmul %73, %74, %cst_54 {dimension_numbers = #tpu.dot_dimension_numbers<[1], [0], [0], [1], [0, 0, 1, 1], [], []>} : vector<64x16xf32>, vector<16x128xf32>, vector<64x128xf32> -> vector<64x128xf32>
    %c0_55 = arith.constant 0 : index
    %c0_56 = arith.constant 0 : index
    %76 = vector.load %arg11[%c0_55, %c0_56] : memref<1x128xf32, #tpu.memory_space<vmem>>, vector<1x128xf32>
    %77 = vector.broadcast %56 : vector<64x1xf32> to vector<64x128xf32>
    %78 = vector.broadcast %76 : vector<1x128xf32> to vector<64x128xf32>
    %79 = arith.mulf %77, %78 : vector<64x128xf32>
    %80 = arith.addf %75, %79 : vector<64x128xf32>
    %c0_57 = arith.constant 0 : index
    %c0_58 = arith.constant 0 : index
    %81 = vector.load %arg12[%c0_57, %c0_58] : memref<1x128xf32, #tpu.memory_space<vmem>>, vector<1x128xf32>
    %82 = vector.broadcast %81 : vector<1x128xf32> to vector<64x128xf32>
    %83 = arith.addf %80, %82 : vector<64x128xf32>
    %cst_59 = arith.constant dense<0.000000e+00> : vector<64x128xf32>
    %84 = tpu.matmul %3, %13, %cst_59 {dimension_numbers = #tpu.dot_dimension_numbers<[1], [0], [0], [1], [0, 0, 1, 1], [], []>} : vector<64x8xf32>, vector<8x128xf32>, vector<64x128xf32> -> vector<64x128xf32>
    %cst_60 = arith.constant dense<0.000000e+00> : vector<64x128xf32>
    %85 = tpu.matmul %4, %15, %cst_60 {dimension_numbers = #tpu.dot_dimension_numbers<[1], [0], [0], [1], [0, 0, 1, 1], [], []>} : vector<64x8xf32>, vector<8x128xf32>, vector<64x128xf32> -> vector<64x128xf32>
    %86 = arith.addf %84, %85 : vector<64x128xf32>
    %87 = arith.addf %86, %83 : vector<64x128xf32>
    %88 = arith.negf %87 : vector<64x128xf32>
    %89 = math.exp %88 : vector<64x128xf32>
    %cst_61 = arith.constant 1.000000e+00 : f32
    %90 = vector.broadcast %cst_61 : f32 to vector<64x128xf32>
    %91 = arith.addf %90, %89 : vector<64x128xf32>
    %92 = arith.divf %90, %91 : vector<64x128xf32>
    %93 = arith.mulf %87, %92 : vector<64x128xf32>
    %c0_62 = arith.constant 0 : index
    %c0_63 = arith.constant 0 : index
    %94 = vector.load %arg13[%c0_62, %c0_63] : memref<128x128xf32, #tpu.memory_space<vmem>>, vector<128x128xf32>
    %cst_64 = arith.constant dense<0.000000e+00> : vector<64x128xf32>
    %95 = tpu.matmul %93, %94, %cst_64 {dimension_numbers = #tpu.dot_dimension_numbers<[1], [0], [0], [1], [0, 0, 1, 1], [], []>} : vector<64x128xf32>, vector<128x128xf32>, vector<64x128xf32> -> vector<64x128xf32>
    %c0_65 = arith.constant 0 : index
    %c0_66 = arith.constant 0 : index
    %96 = vector.load %arg14[%c0_65, %c0_66] : memref<1x128xf32, #tpu.memory_space<vmem>>, vector<1x128xf32>
    %97 = vector.broadcast %96 : vector<1x128xf32> to vector<64x128xf32>
    %98 = arith.addf %95, %97 : vector<64x128xf32>
    %99 = arith.negf %98 : vector<64x128xf32>
    %100 = math.exp %99 : vector<64x128xf32>
    %cst_67 = arith.constant 1.000000e+00 : f32
    %101 = vector.broadcast %cst_67 : f32 to vector<64x128xf32>
    %102 = arith.addf %101, %100 : vector<64x128xf32>
    %103 = arith.divf %101, %102 : vector<64x128xf32>
    %104 = arith.mulf %98, %103 : vector<64x128xf32>
    %c0_68 = arith.constant 0 : index
    %c0_69 = arith.constant 0 : index
    %105 = vector.load %arg15[%c0_68, %c0_69] : memref<128x4xf32, #tpu.memory_space<vmem>>, vector<128x4xf32>
    %cst_70 = arith.constant dense<0.000000e+00> : vector<64x4xf32>
    %106 = tpu.matmul %104, %105, %cst_70 {dimension_numbers = #tpu.dot_dimension_numbers<[1], [0], [0], [1], [0, 0, 1, 1], [], []>} : vector<64x128xf32>, vector<128x4xf32>, vector<64x4xf32> -> vector<64x4xf32>
    %c0_71 = arith.constant 0 : index
    %c0_72 = arith.constant 0 : index
    %107 = vector.load %arg16[%c0_71, %c0_72] : memref<1x4xf32, #tpu.memory_space<vmem>>, vector<1x4xf32>
    %108 = vector.broadcast %107 : vector<1x4xf32> to vector<64x4xf32>
    %109 = arith.addf %106, %108 : vector<64x4xf32>
    %110 = vector.extract_strided_slice %109 {offsets = [0, 0], sizes = [64, 1], strides = [1, 1]} : vector<64x4xf32> to vector<64x1xf32>
    %111 = vector.broadcast %110 : vector<64x1xf32> to vector<64x8xf32>
    %112 = arith.mulf %111, %4 : vector<64x8xf32>
    %cst_73 = arith.constant dense<0.000000e+00> : vector<8x8xf32>
    %113 = tpu.matmul %5, %112, %cst_73 {dimension_numbers = #tpu.dot_dimension_numbers<[1], [0], [0], [1], [0, 0, 1, 1], [], []>} : vector<8x64xf32>, vector<64x8xf32>, vector<8x8xf32> -> vector<8x8xf32>
    %114 = arith.addf %113, %2 : vector<8x8xf32>
    %cst_74 = arith.constant -1.000000e+09 : f32
    %cst_75 = arith.constant 1.000000e+09 : f32
    %115 = vector.broadcast %cst_74 : f32 to vector<8x8xf32>
    %116 = arith.maximumf %115, %114 : vector<8x8xf32>
    %117 = vector.broadcast %cst_75 : f32 to vector<8x8xf32>
    %118 = arith.minimumf %117, %116 : vector<8x8xf32>
    %cst_76 = arith.constant dense<0xFF800000> : vector<8xf32>
    %119 = vector.multi_reduction <maximumf>, %118, %cst_76 [1] : vector<8x8xf32> to vector<8xf32>
    %120 = vector.shape_cast %119 : vector<8xf32> to vector<8x1xf32>
    %121 = vector.broadcast %120 : vector<8x1xf32> to vector<8x8xf32>
    %122 = arith.subf %118, %121 : vector<8x8xf32>
    %123 = math.exp %122 : vector<8x8xf32>
    %cst_77 = arith.constant dense<0.000000e+00> : vector<8xf32>
    %124 = vector.multi_reduction <add>, %123, %cst_77 [1] : vector<8x8xf32> to vector<8xf32>
    %125 = vector.shape_cast %124 : vector<8xf32> to vector<8x1xf32>
    %126 = tpu.reciprocal %125 {approx = true} : vector<8x1xf32> -> vector<8x1xf32>
    %127 = vector.broadcast %126 : vector<8x1xf32> to vector<8x8xf32>
    %128 = arith.mulf %123, %127 : vector<8x8xf32>
    %129 = arith.cmpf one, %128, %128 : vector<8x8xf32>
    %cst_78 = arith.constant 0.000000e+00 : f32
    %130 = vector.broadcast %cst_78 : f32 to vector<8x8xf32>
    %131 = arith.select %129, %130, %128 : vector<8x8xi1>, vector<8x8xf32>
    %132 = vector.extract_strided_slice %11 {offsets = [0, 0], sizes = [8, 8], strides = [1, 1]} : vector<8x32xf32> to vector<8x8xf32>
    %cst_79 = arith.constant dense<0.000000e+00> : vector<8x8xf32>
    %133 = tpu.matmul %131, %132, %cst_79 {dimension_numbers = #tpu.dot_dimension_numbers<[1], [0], [0], [1], [0, 0, 1, 1], [], []>} : vector<8x8xf32>, vector<8x8xf32>, vector<8x8xf32> -> vector<8x8xf32>
    %cst_80 = arith.constant dense<0.000000e+00> : vector<8xf32>
    %134 = vector.multi_reduction <add>, %131, %cst_80 [1] : vector<8x8xf32> to vector<8xf32>
    %135 = vector.shape_cast %134 : vector<8xf32> to vector<8x1xf32>
    %cst_81 = arith.constant dense<0.000000e+00> : vector<8x3xf32>
    %136 = tpu.matmul %131, %1, %cst_81 {dimension_numbers = #tpu.dot_dimension_numbers<[1], [0], [0], [1], [0, 0, 1, 1], [], []>} : vector<8x8xf32>, vector<8x3xf32>, vector<8x3xf32> -> vector<8x3xf32>
    %137 = vector.extract_strided_slice %36 {offsets = [0, 0], sizes = [8, 1], strides = [1, 1]} : vector<8x4xf32> to vector<8x1xf32>
    %138 = vector.broadcast %135 : vector<8x1xf32> to vector<8x3xf32>
    %139 = arith.mulf %1, %138 : vector<8x3xf32>
    %140 = arith.subf %139, %136 : vector<8x3xf32>
    %141 = vector.broadcast %137 : vector<8x1xf32> to vector<8x3xf32>
    %142 = arith.mulf %141, %140 : vector<8x3xf32>
    %cst_82 = arith.constant 2.500000e-01 : f32
    %143 = vector.broadcast %cst_82 : f32 to vector<8x3xf32>
    %144 = arith.mulf %142, %143 : vector<8x3xf32>
    %145 = arith.addf %1, %144 : vector<8x3xf32>
    %146 = vector.extract_strided_slice %109 {offsets = [0, 1], sizes = [64, 1], strides = [1, 1]} : vector<64x4xf32> to vector<64x1xf32>
    %147 = vector.broadcast %146 : vector<64x1xf32> to vector<64x8xf32>
    %148 = arith.mulf %147, %4 : vector<64x8xf32>
    %cst_83 = arith.constant dense<0.000000e+00> : vector<8x8xf32>
    %149 = tpu.matmul %5, %148, %cst_83 {dimension_numbers = #tpu.dot_dimension_numbers<[1], [0], [0], [1], [0, 0, 1, 1], [], []>} : vector<8x64xf32>, vector<64x8xf32>, vector<8x8xf32> -> vector<8x8xf32>
    %150 = arith.addf %149, %2 : vector<8x8xf32>
    %cst_84 = arith.constant -1.000000e+09 : f32
    %cst_85 = arith.constant 1.000000e+09 : f32
    %151 = vector.broadcast %cst_84 : f32 to vector<8x8xf32>
    %152 = arith.maximumf %151, %150 : vector<8x8xf32>
    %153 = vector.broadcast %cst_85 : f32 to vector<8x8xf32>
    %154 = arith.minimumf %153, %152 : vector<8x8xf32>
    %cst_86 = arith.constant dense<0xFF800000> : vector<8xf32>
    %155 = vector.multi_reduction <maximumf>, %154, %cst_86 [1] : vector<8x8xf32> to vector<8xf32>
    %156 = vector.shape_cast %155 : vector<8xf32> to vector<8x1xf32>
    %157 = vector.broadcast %156 : vector<8x1xf32> to vector<8x8xf32>
    %158 = arith.subf %154, %157 : vector<8x8xf32>
    %159 = math.exp %158 : vector<8x8xf32>
    %cst_87 = arith.constant dense<0.000000e+00> : vector<8xf32>
    %160 = vector.multi_reduction <add>, %159, %cst_87 [1] : vector<8x8xf32> to vector<8xf32>
    %161 = vector.shape_cast %160 : vector<8xf32> to vector<8x1xf32>
    %162 = tpu.reciprocal %161 {approx = true} : vector<8x1xf32> -> vector<8x1xf32>
    %163 = vector.broadcast %162 : vector<8x1xf32> to vector<8x8xf32>
    %164 = arith.mulf %159, %163 : vector<8x8xf32>
    %165 = arith.cmpf one, %164, %164 : vector<8x8xf32>
    %cst_88 = arith.constant 0.000000e+00 : f32
    %166 = vector.broadcast %cst_88 : f32 to vector<8x8xf32>
    %167 = arith.select %165, %166, %164 : vector<8x8xi1>, vector<8x8xf32>
    %168 = vector.extract_strided_slice %11 {offsets = [0, 8], sizes = [8, 8], strides = [1, 1]} : vector<8x32xf32> to vector<8x8xf32>
    %cst_89 = arith.constant dense<0.000000e+00> : vector<8x8xf32>
    %169 = tpu.matmul %167, %168, %cst_89 {dimension_numbers = #tpu.dot_dimension_numbers<[1], [0], [0], [1], [0, 0, 1, 1], [], []>} : vector<8x8xf32>, vector<8x8xf32>, vector<8x8xf32> -> vector<8x8xf32>
    %cst_90 = arith.constant dense<0.000000e+00> : vector<8xf32>
    %170 = vector.multi_reduction <add>, %167, %cst_90 [1] : vector<8x8xf32> to vector<8xf32>
    %171 = vector.shape_cast %170 : vector<8xf32> to vector<8x1xf32>
    %cst_91 = arith.constant dense<0.000000e+00> : vector<8x3xf32>
    %172 = tpu.matmul %167, %1, %cst_91 {dimension_numbers = #tpu.dot_dimension_numbers<[1], [0], [0], [1], [0, 0, 1, 1], [], []>} : vector<8x8xf32>, vector<8x3xf32>, vector<8x3xf32> -> vector<8x3xf32>
    %173 = vector.extract_strided_slice %36 {offsets = [0, 1], sizes = [8, 1], strides = [1, 1]} : vector<8x4xf32> to vector<8x1xf32>
    %174 = vector.broadcast %171 : vector<8x1xf32> to vector<8x3xf32>
    %175 = arith.mulf %1, %174 : vector<8x3xf32>
    %176 = arith.subf %175, %172 : vector<8x3xf32>
    %177 = vector.broadcast %173 : vector<8x1xf32> to vector<8x3xf32>
    %178 = arith.mulf %177, %176 : vector<8x3xf32>
    %cst_92 = arith.constant 2.500000e-01 : f32
    %179 = vector.broadcast %cst_92 : f32 to vector<8x3xf32>
    %180 = arith.mulf %178, %179 : vector<8x3xf32>
    %181 = arith.addf %145, %180 : vector<8x3xf32>
    %182 = vector.extract_strided_slice %109 {offsets = [0, 2], sizes = [64, 1], strides = [1, 1]} : vector<64x4xf32> to vector<64x1xf32>
    %183 = vector.broadcast %182 : vector<64x1xf32> to vector<64x8xf32>
    %184 = arith.mulf %183, %4 : vector<64x8xf32>
    %cst_93 = arith.constant dense<0.000000e+00> : vector<8x8xf32>
    %185 = tpu.matmul %5, %184, %cst_93 {dimension_numbers = #tpu.dot_dimension_numbers<[1], [0], [0], [1], [0, 0, 1, 1], [], []>} : vector<8x64xf32>, vector<64x8xf32>, vector<8x8xf32> -> vector<8x8xf32>
    %186 = arith.addf %185, %2 : vector<8x8xf32>
    %cst_94 = arith.constant -1.000000e+09 : f32
    %cst_95 = arith.constant 1.000000e+09 : f32
    %187 = vector.broadcast %cst_94 : f32 to vector<8x8xf32>
    %188 = arith.maximumf %187, %186 : vector<8x8xf32>
    %189 = vector.broadcast %cst_95 : f32 to vector<8x8xf32>
    %190 = arith.minimumf %189, %188 : vector<8x8xf32>
    %cst_96 = arith.constant dense<0xFF800000> : vector<8xf32>
    %191 = vector.multi_reduction <maximumf>, %190, %cst_96 [1] : vector<8x8xf32> to vector<8xf32>
    %192 = vector.shape_cast %191 : vector<8xf32> to vector<8x1xf32>
    %193 = vector.broadcast %192 : vector<8x1xf32> to vector<8x8xf32>
    %194 = arith.subf %190, %193 : vector<8x8xf32>
    %195 = math.exp %194 : vector<8x8xf32>
    %cst_97 = arith.constant dense<0.000000e+00> : vector<8xf32>
    %196 = vector.multi_reduction <add>, %195, %cst_97 [1] : vector<8x8xf32> to vector<8xf32>
    %197 = vector.shape_cast %196 : vector<8xf32> to vector<8x1xf32>
    %198 = tpu.reciprocal %197 {approx = true} : vector<8x1xf32> -> vector<8x1xf32>
    %199 = vector.broadcast %198 : vector<8x1xf32> to vector<8x8xf32>
    %200 = arith.mulf %195, %199 : vector<8x8xf32>
    %201 = arith.cmpf one, %200, %200 : vector<8x8xf32>
    %cst_98 = arith.constant 0.000000e+00 : f32
    %202 = vector.broadcast %cst_98 : f32 to vector<8x8xf32>
    %203 = arith.select %201, %202, %200 : vector<8x8xi1>, vector<8x8xf32>
    %204 = vector.extract_strided_slice %11 {offsets = [0, 16], sizes = [8, 8], strides = [1, 1]} : vector<8x32xf32> to vector<8x8xf32>
    %cst_99 = arith.constant dense<0.000000e+00> : vector<8x8xf32>
    %205 = tpu.matmul %203, %204, %cst_99 {dimension_numbers = #tpu.dot_dimension_numbers<[1], [0], [0], [1], [0, 0, 1, 1], [], []>} : vector<8x8xf32>, vector<8x8xf32>, vector<8x8xf32> -> vector<8x8xf32>
    %cst_100 = arith.constant dense<0.000000e+00> : vector<8xf32>
    %206 = vector.multi_reduction <add>, %203, %cst_100 [1] : vector<8x8xf32> to vector<8xf32>
    %207 = vector.shape_cast %206 : vector<8xf32> to vector<8x1xf32>
    %cst_101 = arith.constant dense<0.000000e+00> : vector<8x3xf32>
    %208 = tpu.matmul %203, %1, %cst_101 {dimension_numbers = #tpu.dot_dimension_numbers<[1], [0], [0], [1], [0, 0, 1, 1], [], []>} : vector<8x8xf32>, vector<8x3xf32>, vector<8x3xf32> -> vector<8x3xf32>
    %209 = vector.extract_strided_slice %36 {offsets = [0, 2], sizes = [8, 1], strides = [1, 1]} : vector<8x4xf32> to vector<8x1xf32>
    %210 = vector.broadcast %207 : vector<8x1xf32> to vector<8x3xf32>
    %211 = arith.mulf %1, %210 : vector<8x3xf32>
    %212 = arith.subf %211, %208 : vector<8x3xf32>
    %213 = vector.broadcast %209 : vector<8x1xf32> to vector<8x3xf32>
    %214 = arith.mulf %213, %212 : vector<8x3xf32>
    %cst_102 = arith.constant 2.500000e-01 : f32
    %215 = vector.broadcast %cst_102 : f32 to vector<8x3xf32>
    %216 = arith.mulf %214, %215 : vector<8x3xf32>
    %217 = arith.addf %181, %216 : vector<8x3xf32>
    %218 = vector.extract_strided_slice %109 {offsets = [0, 3], sizes = [64, 1], strides = [1, 1]} : vector<64x4xf32> to vector<64x1xf32>
    %219 = vector.broadcast %218 : vector<64x1xf32> to vector<64x8xf32>
    %220 = arith.mulf %219, %4 : vector<64x8xf32>
    %cst_103 = arith.constant dense<0.000000e+00> : vector<8x8xf32>
    %221 = tpu.matmul %5, %220, %cst_103 {dimension_numbers = #tpu.dot_dimension_numbers<[1], [0], [0], [1], [0, 0, 1, 1], [], []>} : vector<8x64xf32>, vector<64x8xf32>, vector<8x8xf32> -> vector<8x8xf32>
    %222 = arith.addf %221, %2 : vector<8x8xf32>
    %cst_104 = arith.constant -1.000000e+09 : f32
    %cst_105 = arith.constant 1.000000e+09 : f32
    %223 = vector.broadcast %cst_104 : f32 to vector<8x8xf32>
    %224 = arith.maximumf %223, %222 : vector<8x8xf32>
    %225 = vector.broadcast %cst_105 : f32 to vector<8x8xf32>
    %226 = arith.minimumf %225, %224 : vector<8x8xf32>
    %cst_106 = arith.constant dense<0xFF800000> : vector<8xf32>
    %227 = vector.multi_reduction <maximumf>, %226, %cst_106 [1] : vector<8x8xf32> to vector<8xf32>
    %228 = vector.shape_cast %227 : vector<8xf32> to vector<8x1xf32>
    %229 = vector.broadcast %228 : vector<8x1xf32> to vector<8x8xf32>
    %230 = arith.subf %226, %229 : vector<8x8xf32>
    %231 = math.exp %230 : vector<8x8xf32>
    %cst_107 = arith.constant dense<0.000000e+00> : vector<8xf32>
    %232 = vector.multi_reduction <add>, %231, %cst_107 [1] : vector<8x8xf32> to vector<8xf32>
    %233 = vector.shape_cast %232 : vector<8xf32> to vector<8x1xf32>
    %234 = tpu.reciprocal %233 {approx = true} : vector<8x1xf32> -> vector<8x1xf32>
    %235 = vector.broadcast %234 : vector<8x1xf32> to vector<8x8xf32>
    %236 = arith.mulf %231, %235 : vector<8x8xf32>
    %237 = arith.cmpf one, %236, %236 : vector<8x8xf32>
    %cst_108 = arith.constant 0.000000e+00 : f32
    %238 = vector.broadcast %cst_108 : f32 to vector<8x8xf32>
    %239 = arith.select %237, %238, %236 : vector<8x8xi1>, vector<8x8xf32>
    %240 = vector.extract_strided_slice %11 {offsets = [0, 24], sizes = [8, 8], strides = [1, 1]} : vector<8x32xf32> to vector<8x8xf32>
    %cst_109 = arith.constant dense<0.000000e+00> : vector<8x8xf32>
    %241 = tpu.matmul %239, %240, %cst_109 {dimension_numbers = #tpu.dot_dimension_numbers<[1], [0], [0], [1], [0, 0, 1, 1], [], []>} : vector<8x8xf32>, vector<8x8xf32>, vector<8x8xf32> -> vector<8x8xf32>
    %cst_110 = arith.constant dense<0.000000e+00> : vector<8xf32>
    %242 = vector.multi_reduction <add>, %239, %cst_110 [1] : vector<8x8xf32> to vector<8xf32>
    %243 = vector.shape_cast %242 : vector<8xf32> to vector<8x1xf32>
    %cst_111 = arith.constant dense<0.000000e+00> : vector<8x3xf32>
    %244 = tpu.matmul %239, %1, %cst_111 {dimension_numbers = #tpu.dot_dimension_numbers<[1], [0], [0], [1], [0, 0, 1, 1], [], []>} : vector<8x8xf32>, vector<8x3xf32>, vector<8x3xf32> -> vector<8x3xf32>
    %245 = vector.extract_strided_slice %36 {offsets = [0, 3], sizes = [8, 1], strides = [1, 1]} : vector<8x4xf32> to vector<8x1xf32>
    %246 = vector.broadcast %243 : vector<8x1xf32> to vector<8x3xf32>
    %247 = arith.mulf %1, %246 : vector<8x3xf32>
    %248 = arith.subf %247, %244 : vector<8x3xf32>
    %249 = vector.broadcast %245 : vector<8x1xf32> to vector<8x3xf32>
    %250 = arith.mulf %249, %248 : vector<8x3xf32>
    %cst_112 = arith.constant 2.500000e-01 : f32
    %251 = vector.broadcast %cst_112 : f32 to vector<8x3xf32>
    %252 = arith.mulf %250, %251 : vector<8x3xf32>
    %253 = arith.addf %217, %252 : vector<8x3xf32>
    %254 = tpu.concatenate %133, %169, %205, %241 in 1 : vector<8x8xf32>, vector<8x8xf32>, vector<8x8xf32>, vector<8x8xf32> -> vector<8x32xf32>
    %c0_113 = arith.constant 0 : index
    %c0_114 = arith.constant 0 : index
    %255 = vector.load %arg21[%c0_113, %c0_114] : memref<32x32xf32, #tpu.memory_space<vmem>>, vector<32x32xf32>
    %cst_115 = arith.constant dense<0.000000e+00> : vector<8x32xf32>
    %256 = tpu.matmul %254, %255, %cst_115 {dimension_numbers = #tpu.dot_dimension_numbers<[1], [0], [0], [1], [0, 0, 1, 1], [], []>} : vector<8x32xf32>, vector<32x32xf32>, vector<8x32xf32> -> vector<8x32xf32>
    %c0_116 = arith.constant 0 : index
    %c0_117 = arith.constant 0 : index
    %257 = vector.load %arg22[%c0_116, %c0_117] : memref<1x32xf32, #tpu.memory_space<vmem>>, vector<1x32xf32>
    %258 = vector.broadcast %257 : vector<1x32xf32> to vector<8x32xf32>
    %259 = arith.addf %256, %258 : vector<8x32xf32>
    %260 = arith.addf %0, %259 : vector<8x32xf32>
    %cst_118 = arith.constant dense<0.000000e+00> : vector<8xf32>
    %261 = vector.multi_reduction <add>, %260, %cst_118 [1] : vector<8x32xf32> to vector<8xf32>
    %262 = vector.shape_cast %261 : vector<8xf32> to vector<8x1xf32>
    %cst_119 = arith.constant 3.200000e+01 : f32
    %263 = vector.broadcast %cst_119 : f32 to vector<8x1xf32>
    %264 = arith.divf %262, %263 : vector<8x1xf32>
    %265 = vector.broadcast %264 : vector<8x1xf32> to vector<8x32xf32>
    %266 = arith.subf %260, %265 : vector<8x32xf32>
    %267 = arith.mulf %266, %266 : vector<8x32xf32>
    %cst_120 = arith.constant dense<0.000000e+00> : vector<8xf32>
    %268 = vector.multi_reduction <add>, %267, %cst_120 [1] : vector<8x32xf32> to vector<8xf32>
    %269 = vector.shape_cast %268 : vector<8xf32> to vector<8x1xf32>
    %cst_121 = arith.constant 3.200000e+01 : f32
    %270 = vector.broadcast %cst_121 : f32 to vector<8x1xf32>
    %271 = arith.divf %269, %270 : vector<8x1xf32>
    %272 = vector.broadcast %264 : vector<8x1xf32> to vector<8x32xf32>
    %273 = arith.subf %260, %272 : vector<8x32xf32>
    %cst_122 = arith.constant 9.99999974E-6 : f32
    %274 = vector.broadcast %cst_122 : f32 to vector<8x1xf32>
    %275 = arith.addf %271, %274 : vector<8x1xf32>
    %276 = math.rsqrt %275 : vector<8x1xf32>
    %277 = vector.broadcast %276 : vector<8x1xf32> to vector<8x32xf32>
    %278 = arith.mulf %273, %277 : vector<8x32xf32>
    %c0_123 = arith.constant 0 : index
    %c0_124 = arith.constant 0 : index
    %279 = vector.load %arg23[%c0_123, %c0_124] : memref<1x32xf32, #tpu.memory_space<vmem>>, vector<1x32xf32>
    %280 = vector.broadcast %279 : vector<1x32xf32> to vector<8x32xf32>
    %281 = arith.mulf %278, %280 : vector<8x32xf32>
    %c0_125 = arith.constant 0 : index
    %c0_126 = arith.constant 0 : index
    %282 = vector.load %arg24[%c0_125, %c0_126] : memref<1x32xf32, #tpu.memory_space<vmem>>, vector<1x32xf32>
    %283 = vector.broadcast %282 : vector<1x32xf32> to vector<8x32xf32>
    %284 = arith.addf %281, %283 : vector<8x32xf32>
    %c0_127 = arith.constant 0 : index
    %c0_128 = arith.constant 0 : index
    %285 = vector.load %arg28[%c0_127, %c0_128] : memref<8x32xf32, #tpu.memory_space<vmem>>, vector<8x32xf32>
    tpu.vector_store %arg28[%c0_127, %c0_128], %284 {strides = array<i32>} : memref<8x32xf32, #tpu.memory_space<vmem>>, vector<8x32xf32>,
    %c0_129 = arith.constant 0 : index
    %c0_130 = arith.constant 0 : index
    %286 = vector.load %arg29[%c0_129, %c0_130] : memref<8x3xf32, #tpu.memory_space<vmem>>, vector<8x3xf32>
    tpu.vector_store %arg29[%c0_129, %c0_130], %253 {strides = array<i32>} : memref<8x3xf32, #tpu.memory_space<vmem>>, vector<8x3xf32>,
    return
  }
}

</mosaic_0001>

<llo_original>
// kernel: tpu_custom_call.1
$region0: #{tpu_custom_call.1}
  #allocation0 [shape = 'u32[]', space=smem, size = 0x4, offset = 0x4, fixed_abs, tag = 'smem constant byte address 0x4 - core index']
  #allocation1 [shape = 'u32[72,128]{1,0:T(1,128)}', space=vmem, size = 0x9000, scoped, tag = 'internal scratch']
  #allocation2 [shape = 'f32[1,1]{1,0:T(1,128)S(1)}', space=vmem, size = 0x200, scoped, tag = 'scoped memory for tpu_custom_call.1']
  %s0 = inlined_call_operand.smem [shape: u32[30], index: -1, kind: input, shape index: {}]
  %s1 = sld [smem:[%s0]]
  %s2 = scalar_lea.smem %s0, 1
  %s3 = sld [smem:[%s2]]
  %s4 = scalar_lea.smem %s0, 2
  %s5 = sld [smem:[%s4]]
  %s6 = scalar_lea.smem %s0, 3
  %s7 = sld [smem:[%s6]]
  %s8 = scalar_lea.smem %s0, 4
  %s9 = sld [smem:[%s8]]
  %s10 = scalar_lea.smem %s0, 5
  %s11 = sld [smem:[%s10]]
  %s12 = scalar_lea.smem %s0, 6
  %s13 = sld [smem:[%s12]]
  %s14 = scalar_lea.smem %s0, 7
  %s15 = sld [smem:[%s14]]
  %s16 = scalar_lea.smem %s0, 8
  %s17 = sld [smem:[%s16]]
  %s18 = scalar_lea.smem %s0, 9
  %s19 = sld [smem:[%s18]]
  %s20 = scalar_lea.smem %s0, 10
  %s21 = sld [smem:[%s20]]
  %s22 = scalar_lea.smem %s0, 11
  %s23 = sld [smem:[%s22]]
  %s24 = scalar_lea.smem %s0, 12
  %s25 = sld [smem:[%s24]]
  %s26 = scalar_lea.smem %s0, 13
  %s27 = sld [smem:[%s26]]
  %s28 = scalar_lea.smem %s0, 14
  %s29 = sld [smem:[%s28]]
  %s30 = scalar_lea.smem %s0, 15
  %s31 = sld [smem:[%s30]]
  %s32 = scalar_lea.smem %s0, 16
  %s33 = sld [smem:[%s32]]
  %s34 = scalar_lea.smem %s0, 17
  %s35 = sld [smem:[%s34]]
  %s36 = scalar_lea.smem %s0, 18
  %s37 = sld [smem:[%s36]]
  %s38 = scalar_lea.smem %s0, 19
  %s39 = sld [smem:[%s38]]
  %s40 = scalar_lea.smem %s0, 20
  %s41 = sld [smem:[%s40]]
  %s42 = scalar_lea.smem %s0, 21
  %s43 = sld [smem:[%s42]]
  %s44 = scalar_lea.smem %s0, 22
  %s45 = sld [smem:[%s44]]
  %s46 = scalar_lea.smem %s0, 23
  %s47 = sld [smem:[%s46]]
  %s48 = scalar_lea.smem %s0, 24
  %s49 = sld [smem:[%s48]]
  %s50 = scalar_lea.smem %s0, 25
  %s51 = sld [smem:[%s50]]
  %s52 = scalar_lea.smem %s0, 26
  %s53 = sld [smem:[%s52]]
  %s54 = scalar_lea.smem %s0, 27
  %s55 = sld [smem:[%s54]]
  %s56 = scalar_lea.smem %s0, 28
  %s57 = sld [smem:[%s56]]
  %s58 = scalar_lea.smem %s0, 29
  %s59 = sld [smem:[%s58]]
  %60 = xla_tuple %s57, %s59
  %s61 = sld [smem:[#allocation0]]
  $region130: #{tpu_custom_call.1} parent=0
    _
  %s63 = ssub.s32 1, %s61
  %s64 = scalar_select 0, %s63, %s61
  %v65 = vstv %s41
  %66 = vst [vmem:[#allocation2] sm:$0x1] %v65
  $region1: #{tpu_custom_call.1} parent=0
    #allocation3 [shape = 'u8[4096]{0}', space=vmem, size = 0x1000, scoped, tag = 'output window, operand 0, single buffered']
    #allocation4 [shape = 's32[1]{0}', space=sflag, size = 0x4, scoped, tag = 'scoped memory for tpu_custom_call.1']
    %67 = vsyncpa [#allocation4], 0
    // Predicated region
    $region2: #{tpu_custom_call.1} parent=1 // pred_check
      _
    $region3: #{tpu_custom_call.1} parent=1 // pred_check_branch
      %69 = sbr.rel (0) target = $region5
    $region4: #{tpu_custom_call.1} parent=1 // pred_region
      _
    $region5: #{tpu_custom_call.1} parent=1 // pred_fallthru
      _
    // Predicated region
    $region6: #{tpu_custom_call.1} parent=1 // pred_check
      _
    $region7: #{tpu_custom_call.1} parent=1 // pred_check_branch
      %71 = sbr.rel (0) target = $region9
    $region8: #{tpu_custom_call.1} parent=1 // pred_region
      _
    $region9: #{tpu_custom_call.1} parent=1 // pred_fallthru
      _
    // Predicated region
    $region10: #{tpu_custom_call.1} parent=1 // pred_check
      _
    $region11: #{tpu_custom_call.1} parent=1 // pred_check_branch
      %73 = sbr.rel (0) target = $region13
    $region12: #{tpu_custom_call.1} parent=1 // pred_region
      _
    $region13: #{tpu_custom_call.1} parent=1 // pred_fallthru
      _
    // Predicated region
    $region14: #{tpu_custom_call.1} parent=1 // pred_check
      _
    $region15: #{tpu_custom_call.1} parent=1 // pred_check_branch
      %75 = sbr.rel (0) target = $region17
    $region16: #{tpu_custom_call.1} parent=1 // pred_region
      _
    $region17: #{tpu_custom_call.1} parent=1 // pred_fallthru
      _
    // Predicated region
    $region18: #{tpu_custom_call.1} parent=1 // pred_check
      _
    $region19: #{tpu_custom_call.1} parent=1 // pred_check_branch
      %77 = sbr.rel (0) target = $region21
    $region20: #{tpu_custom_call.1} parent=1 // pred_region
      _
    $region21: #{tpu_custom_call.1} parent=1 // pred_fallthru
      _
    // Predicated region
    $region22: #{tpu_custom_call.1} parent=1 // pred_check
      _
    $region23: #{tpu_custom_call.1} parent=1 // pred_check_branch
      %79 = sbr.rel (0) target = $region25
    $region24: #{tpu_custom_call.1} parent=1 // pred_region
      _
    $region25: #{tpu_custom_call.1} parent=1 // pred_fallthru
      _
    // Predicated region
    $region26: #{tpu_custom_call.1} parent=1 // pred_check
      _
    $region27: #{tpu_custom_call.1} parent=1 // pred_check_branch
      %81 = sbr.rel (0) target = $region29
    $region28: #{tpu_custom_call.1} parent=1 // pred_region
      _
    $region29: #{tpu_custom_call.1} parent=1 // pred_fallthru
      _
    // Predicated region
    $region30: #{tpu_custom_call.1} parent=1 // pred_check
      _
    $region31: #{tpu_custom_call.1} parent=1 // pred_check_branch
      %83 = sbr.rel (0) target = $region33
    $region32: #{tpu_custom_call.1} parent=1 // pred_region
      _
    $region33: #{tpu_custom_call.1} parent=1 // pred_fallthru
      _
    // Predicated region
    $region34: #{tpu_custom_call.1} parent=1 // pred_check
      _
    $region35: #{tpu_custom_call.1} parent=1 // pred_check_branch
      %85 = sbr.rel (0) target = $region37
    $region36: #{tpu_custom_call.1} parent=1 // pred_region
      _
    $region37: #{tpu_custom_call.1} parent=1 // pred_fallthru
      _
    // Predicated region
    $region38: #{tpu_custom_call.1} parent=1 // pred_check
      _
    $region39: #{tpu_custom_call.1} parent=1 // pred_check_branch
      %87 = sbr.rel (0) target = $region41
    $region40: #{tpu_custom_call.1} parent=1 // pred_region
      _
    $region41: #{tpu_custom_call.1} parent=1 // pred_fallthru
      _
    // Predicated region
    $region42: #{tpu_custom_call.1} parent=1 // pred_check
      _
    $region43: #{tpu_custom_call.1} parent=1 // pred_check_branch
      %89 = sbr.rel (0) target = $region45
    $region44: #{tpu_custom_call.1} parent=1 // pred_region
      _
    $region45: #{tpu_custom_call.1} parent=1 // pred_fallthru
      _
    // Predicated region
    $region46: #{tpu_custom_call.1} parent=1 // pred_check
      _
    $region47: #{tpu_custom_call.1} parent=1 // pred_check_branch
      %91 = sbr.rel (0) target = $region49
    $region48: #{tpu_custom_call.1} parent=1 // pred_region
      _
    $region49: #{tpu_custom_call.1} parent=1 // pred_fallthru
      _
    // Predicated region
    $region50: #{tpu_custom_call.1} parent=1 // pred_check
      _
    $region51: #{tpu_custom_call.1} parent=1 // pred_check_branch
      %93 = sbr.rel (0) target = $region53
    $region52: #{tpu_custom_call.1} parent=1 // pred_region
      _
    $region53: #{tpu_custom_call.1} parent=1 // pred_fallthru
      _
    // Predicated region
    $region54: #{tpu_custom_call.1} parent=1 // pred_check
      _
    $region55: #{tpu_custom_call.1} parent=1 // pred_check_branch
      %95 = sbr.rel (0) target = $region57
    $region56: #{tpu_custom_call.1} parent=1 // pred_region
      _
    $region57: #{tpu_custom_call.1} parent=1 // pred_fallthru
      _
    // Predicated region
    $region58: #{tpu_custom_call.1} parent=1 // pred_check
      _
    $region59: #{tpu_custom_call.1} parent=1 // pred_check_branch
      %97 = sbr.rel (0) target = $region61
    $region60: #{tpu_custom_call.1} parent=1 // pred_region
      _
    $region61: #{tpu_custom_call.1} parent=1 // pred_fallthru
      _
    // Predicated region
    $region62: #{tpu_custom_call.1} parent=1 // pred_check
      _
    $region63: #{tpu_custom_call.1} parent=1 // pred_check_branch
      %99 = sbr.rel (0) target = $region65
    $region64: #{tpu_custom_call.1} parent=1 // pred_region
      _
    $region65: #{tpu_custom_call.1} parent=1 // pred_fallthru
      _
    // Predicated region
    $region66: #{tpu_custom_call.1} parent=1 // pred_check
      _
    $region67: #{tpu_custom_call.1} parent=1 // pred_check_branch
      %101 = sbr.rel (0) target = $region69
    $region68: #{tpu_custom_call.1} parent=1 // pred_region
      _
    $region69: #{tpu_custom_call.1} parent=1 // pred_fallthru
      _
    // Predicated region
    $region70: #{tpu_custom_call.1} parent=1 // pred_check
      _
    $region71: #{tpu_custom_call.1} parent=1 // pred_check_branch
      %103 = sbr.rel (0) target = $region73
    $region72: #{tpu_custom_call.1} parent=1 // pred_region
      _
    $region73: #{tpu_custom_call.1} parent=1 // pred_fallthru
      _
    // Predicated region
    $region74: #{tpu_custom_call.1} parent=1 // pred_check
      _
    $region75: #{tpu_custom_call.1} parent=1 // pred_check_branch
      %105 = sbr.rel (0) target = $region77
    $region76: #{tpu_custom_call.1} parent=1 // pred_region
      _
    $region77: #{tpu_custom_call.1} parent=1 // pred_fallthru
      _
    // Predicated region
    $region78: #{tpu_custom_call.1} parent=1 // pred_check
      _
    $region79: #{tpu_custom_call.1} parent=1 // pred_check_branch
      %107 = sbr.rel (0) target = $region81
    $region80: #{tpu_custom_call.1} parent=1 // pred_region
      _
    $region81: #{tpu_custom_call.1} parent=1 // pred_fallthru
      _
    // Predicated region
    $region82: #{tpu_custom_call.1} parent=1 // pred_check
      _
    $region83: #{tpu_custom_call.1} parent=1 // pred_check_branch
      %109 = sbr.rel (0) target = $region85
    $region84: #{tpu_custom_call.1} parent=1 // pred_region
      _
    $region85: #{tpu_custom_call.1} parent=1 // pred_fallthru
      _
    // Predicated region
    $region86: #{tpu_custom_call.1} parent=1 // pred_check
      _
    $region87: #{tpu_custom_call.1} parent=1 // pred_check_branch
      %111 = sbr.rel (0) target = $region89
    $region88: #{tpu_custom_call.1} parent=1 // pred_region
      _
    $region89: #{tpu_custom_call.1} parent=1 // pred_fallthru
      _
    // Predicated region
    $region90: #{tpu_custom_call.1} parent=1 // pred_check
      _
    $region91: #{tpu_custom_call.1} parent=1 // pred_check_branch
      %113 = sbr.rel (0) target = $region93
    $region92: #{tpu_custom_call.1} parent=1 // pred_region
      _
    $region93: #{tpu_custom_call.1} parent=1 // pred_fallthru
      _
    // Predicated region
    $region94: #{tpu_custom_call.1} parent=1 // pred_check
      _
    $region95: #{tpu_custom_call.1} parent=1 // pred_check_branch
      %115 = sbr.rel (0) target = $region97
    $region96: #{tpu_custom_call.1} parent=1 // pred_region
      _
    $region97: #{tpu_custom_call.1} parent=1 // pred_fallthru
      _
    // Predicated region
    $region98: #{tpu_custom_call.1} parent=1 // pred_check
      _
    $region99: #{tpu_custom_call.1} parent=1 // pred_check_branch
      %117 = sbr.rel (0) target = $region101
    $region100: #{tpu_custom_call.1} parent=1 // pred_region
      _
    $region101: #{tpu_custom_call.1} parent=1 // pred_fallthru
      _
    // Predicated region
    $region102: #{tpu_custom_call.1} parent=1 // pred_check
      _
    $region103: #{tpu_custom_call.1} parent=1 // pred_check_branch
      %119 = sbr.rel (0) target = $region105
    $region104: #{tpu_custom_call.1} parent=1 // pred_region
      _
    $region105: #{tpu_custom_call.1} parent=1 // pred_fallthru
      _
    // Predicated region
    $region106: #{tpu_custom_call.1} parent=1 // pred_check
      _
    $region107: #{tpu_custom_call.1} parent=1 // pred_check_branch
      %121 = sbr.rel (0) target = $region109
    $region108: #{tpu_custom_call.1} parent=1 // pred_region
      _
    $region109: #{tpu_custom_call.1} parent=1 // pred_fallthru
      _
    // Predicated region
    $region110: #{tpu_custom_call.1} parent=1 // pred_check
      _
    $region111: #{tpu_custom_call.1} parent=1 // pred_check_branch
      %123 = sbr.rel (0) target = $region113
    $region112: #{tpu_custom_call.1} parent=1 // pred_region
      _
    $region113: #{tpu_custom_call.1} parent=1 // pred_fallthru
      _
    %v124 = vld [vmem:[%s1] sm:$0xff]
    %v125 = vld [vmem:[%s3] sm:$0xff]
    %v126 = vld [vmem:[%s5] sm:$0xff]
    %v127 = vld [vmem:[%s51] sm:$0xff]
    %v128 = vld [vmem:[%s51 + $0x8] sm:$0xff]
    %v129 = vld [vmem:[%s51 + $0x10] sm:$0xff]
    %v130 = vld [vmem:[%s51 + $0x18] sm:$0xff]
    %v131 = vld [vmem:[%s51 + $0x20] sm:$0xff]
    %v132 = vld [vmem:[%s51 + $0x28] sm:$0xff]
    %v133 = vld [vmem:[%s51 + $0x30] sm:$0xff]
    %v134 = vld [vmem:[%s51 + $0x38] sm:$0xff]
    %v135 = vld [vmem:[%s53] sm:$0xff]
    %v136 = vld [vmem:[%s53 + $0x8] sm:$0xff]
    %v137 = vld [vmem:[%s53 + $0x10] sm:$0xff]
    %v138 = vld [vmem:[%s53 + $0x18] sm:$0xff]
    %v139 = vld [vmem:[%s53 + $0x20] sm:$0xff]
    %v140 = vld [vmem:[%s53 + $0x28] sm:$0xff]
    %v141 = vld [vmem:[%s53 + $0x30] sm:$0xff]
    %v142 = vld [vmem:[%s53 + $0x38] sm:$0xff]
    %v143 = vld [vmem:[%s55] sm:$0xff]
    %v144 = vld [vmem:[%s7] sm:$0xff]
    %v145 = vld [vmem:[%s7 + $0x8] sm:$0xff]
    %v146 = vld [vmem:[%s7 + $0x10] sm:$0xff]
    %v147 = vld [vmem:[%s7 + $0x18] sm:$0xff]
    %vm148 = vcmask 261120
    %v150 = vsel %vm148, %v124, 0
    %152 = vmatpush.msra.mxu0 0.0
    %153 = vmatpush.msra.mxu0 0.0
    %154 = vmatpush.msra.mxu0 0.0
    %155 = vmatpush.msra.mxu0 0.0
    %156 = vmatpush.msra.mxu0 0.0
    %157 = vmatpush.msra.mxu0 0.0
    %158 = vmatpush.msra.mxu0 0.0
    %159 = vmatpush.msra.mxu0 0.0
    %160 = vmatpush.msra.mxu0 0.0
    %161 = vmatpush.msra.mxu0 0.0
    %162 = vmatpush.msra.mxu0 0.0
    %163 = vmatpush.msra.mxu0 0.0
    %164 = vmatpush.msra.mxu0 %v147
    %165 = vmatpush.msra.mxu0 %v146
    %166 = vmatpush.msra.mxu0 %v145
    %167 = vmatpush.msra.mxu0 %v144
    %168 = vmatmul.f32.gmra.mxu0 %v150
    %v169 = vpop.f32.mrf.mxu0
    %v170 = vadd.f32 0.0, %v169
    %171 = vdwg.mxu0
    %v172 = vld [vmem:[%s9] sm:$0xff]
    %v173 = vld [vmem:[%s9 + $0x8] sm:$0xff]
    %v174 = vld [vmem:[%s9 + $0x10] sm:$0xff]
    %v175 = vld [vmem:[%s9 + $0x18] sm:$0xff]
    %176 = vmatpush.msra.mxu0 0.0
    %177 = vmatpush.msra.mxu0 0.0
    %178 = vmatpush.msra.mxu0 0.0
    %179 = vmatpush.msra.mxu0 0.0
    %180 = vmatpush.msra.mxu0 0.0
    %181 = vmatpush.msra.mxu0 0.0
    %182 = vmatpush.msra.mxu0 0.0
    %183 = vmatpush.msra.mxu0 0.0
    %184 = vmatpush.msra.mxu0 0.0
    %185 = vmatpush.msra.mxu0 0.0
    %186 = vmatpush.msra.mxu0 0.0
    %187 = vmatpush.msra.mxu0 0.0
    %188 = vmatpush.msra.mxu0 %v175
    %189 = vmatpush.msra.mxu0 %v174
    %190 = vmatpush.msra.mxu0 %v173
    %191 = vmatpush.msra.mxu0 %v172
    %192 = vmatmul.f32.gmra.mxu0 %v150
    %v193 = vpop.f32.mrf.mxu0
    %v194 = vadd.f32 0.0, %v193
    %195 = vdwg.mxu0
    %v196 = vld [vmem:[%s11] sm:$0xff]
    %v197 = vld [vmem:[%s11 + $0x8] sm:$0xff]
    %v198 = vld [vmem:[%s11 + $0x10] sm:$0xff]
    %v199 = vld [vmem:[%s11 + $0x18] sm:$0xff]
    %200 = vmatpush.msra.mxu0 0.0
    %201 = vmatpush.msra.mxu0 0.0
    %202 = vmatpush.msra.mxu0 0.0
    %203 = vmatpush.msra.mxu0 0.0
    %204 = vmatpush.msra.mxu0 0.0
    %205 = vmatpush.msra.mxu0 0.0
    %206 = vmatpush.msra.mxu0 0.0
    %207 = vmatpush.msra.mxu0 0.0
    %208 = vmatpush.msra.mxu0 0.0
    %209 = vmatpush.msra.mxu0 0.0
    %210 = vmatpush.msra.mxu0 0.0
    %211 = vmatpush.msra.mxu0 0.0
    %212 = vmatpush.msra.mxu0 %v199
    %213 = vmatpush.msra.mxu0 %v198
    %214 = vmatpush.msra.mxu0 %v197
    %215 = vmatpush.msra.mxu0 %v196
    %216 = vmatmul.f32.gmra.mxu0 %v150
    %v217 = vpop.f32.mrf.mxu0
    %v218 = vadd.f32 0.0, %v217
    %219 = vdwg.mxu0
    %v220 = vld [vmem:[%s17] sm:$0xff]
    %v221 = vld [vmem:[%s17 + $0x8] sm:$0xff]
    %v222 = vld [vmem:[%s17 + $0x10] sm:$0xff]
    %v223 = vld [vmem:[%s17 + $0x18] sm:$0xff]
    %v225 = vsel %vm148, %v170, 0
    %227 = vmatpush.msra.mxu0 0.0
    %228 = vmatpush.msra.mxu0 0.0
    %229 = vmatpush.msra.mxu0 0.0
    %230 = vmatpush.msra.mxu0 0.0
    %231 = vmatpush.msra.mxu0 0.0
    %232 = vmatpush.msra.mxu0 0.0
    %233 = vmatpush.msra.mxu0 0.0
    %234 = vmatpush.msra.mxu0 0.0
    %235 = vmatpush.msra.mxu0 0.0
    %236 = vmatpush.msra.mxu0 0.0
    %237 = vmatpush.msra.mxu0 0.0
    %238 = vmatpush.msra.mxu0 0.0
    %239 = vmatpush.msra.mxu0 %v223
    %240 = vmatpush.msra.mxu0 %v222
    %241 = vmatpush.msra.mxu0 %v221
    %242 = vmatpush.msra.mxu0 %v220
    %243 = vmatmul.f32.gmra.mxu0 %v225
    %v244 = vpop.f32.mrf.mxu0
    %v245 = vadd.f32 0.0, %v244
    %246 = vdwg.mxu0
    %v247 = vld [vmem:[%s19] sm:$0xff]
    %v248 = vld [vmem:[%s19 + $0x8] sm:$0xff]
    %v249 = vld [vmem:[%s19 + $0x10] sm:$0xff]
    %v250 = vld [vmem:[%s19 + $0x18] sm:$0xff]
    %v252 = vsel %vm148, %v194, 0
    %254 = vmatpush.msra.mxu0 0.0
    %255 = vmatpush.msra.mxu0 0.0
    %256 = vmatpush.msra.mxu0 0.0
    %257 = vmatpush.msra.mxu0 0.0
    %258 = vmatpush.msra.mxu0 0.0
    %259 = vmatpush.msra.mxu0 0.0
    %260 = vmatpush.msra.mxu0 0.0
    %261 = vmatpush.msra.mxu0 0.0
    %262 = vmatpush.msra.mxu0 0.0
    %263 = vmatpush.msra.mxu0 0.0
    %264 = vmatpush.msra.mxu0 0.0
    %265 = vmatpush.msra.mxu0 0.0
    %266 = vmatpush.msra.mxu0 %v250
    %267 = vmatpush.msra.mxu0 %v249
    %268 = vmatpush.msra.mxu0 %v248
    %269 = vmatpush.msra.mxu0 %v247
    %270 = vmatmul.f32.gmra.mxu0 %v252
    %v271 = vpop.f32.mrf.mxu0
    %v272 = vadd.f32 0.0, %v271
    %273 = vdwg.mxu0
    %v274 = vld [vmem:[%s35] sm:$0xff]
    %v275 = vld [vmem:[%s35 + $0x8] sm:$0xff]
    %v276 = vld [vmem:[%s35 + $0x10] sm:$0xff]
    %v277 = vld [vmem:[%s35 + $0x18] sm:$0xff]
    %v278 = vld [vmem:[%s37] sm:$0x1]
    %v280 = vperm.slane %v278, 0
    %v283 = vsel %vm148, %v218, 0
    %285 = vmatpush.msra.mxu0 0.0
    %286 = vmatpush.msra.mxu0 0.0
    %287 = vmatpush.msra.mxu0 0.0
    %288 = vmatpush.msra.mxu0 0.0
    %289 = vmatpush.msra.mxu0 0.0
    %290 = vmatpush.msra.mxu0 0.0
    %291 = vmatpush.msra.mxu0 0.0
    %292 = vmatpush.msra.mxu0 0.0
    %293 = vmatpush.msra.mxu0 0.0
    %294 = vmatpush.msra.mxu0 0.0
    %295 = vmatpush.msra.mxu0 0.0
    %296 = vmatpush.msra.mxu0 0.0
    %297 = vmatpush.msra.mxu0 %v277
    %298 = vmatpush.msra.mxu0 %v276
    %299 = vmatpush.msra.mxu0 %v275
    %300 = vmatpush.msra.mxu0 %v274
    %301 = vmatmul.f32.gmra.mxu0 %v283
    %v302 = vpop.f32.mrf.mxu0
    %v303 = vadd.f32 %v280, %v302
    %304 = vdwg.mxu0
    %v305 = vxor.u32 %v303, 2147483648
    %v306 = vmul.f32 %v305, 1.442695
    %v307 = vpow.pop %v306
    %v308 = vadd.f32 %v307, 1.0
    %v309 = vrcp.pop %v308
    %v310 = vmul.f32 %v308, %v309
    %v311 = vsub.f32 1.0, %v310
    %v312 = vmul.f32 %v309, %v311
    %v313 = vadd.f32 %v309, %v312
    %vm314 = vweird.f32 %v308
    %vm315 = vweird.f32 %v309
    %vm316 = vmor %vm314, %vm315
    %v317 = vsel %vm316, %v309, %v313
    %v318 = vand.u32 2147483647, %v308
    %vm319 = vcmp.eq.f32.partialorder %v318, 8.507059e+37
    %v320 = vand.u32 %v308, 2147483648
    %v321 = vor.u32 1.1754944e-38, %v320
    %v322 = vsel %vm319, %v321, %v317
    %v323 = vmul.f32 1.0, %v322
    %v324 = vmul.f32 %v303, %v323
    %v325 = vld [vmem:[%s39] sm:$0xff]
    %v326 = vld [vmem:[%s39 + $0x8] sm:$0xff]
    %v327 = vld [vmem:[%s39 + $0x10] sm:$0xff]
    %v328 = vld [vmem:[%s39 + $0x18] sm:$0xff]
    %v329 = vld [vmem:[%s39 + $0x20] sm:$0xff]
    %v330 = vld [vmem:[%s39 + $0x28] sm:$0xff]
    %v331 = vld [vmem:[%s39 + $0x30] sm:$0xff]
    %v332 = vld [vmem:[%s39 + $0x38] sm:$0xff]
    %v333 = vld [vmem:[%s39 + $0x40] sm:$0xff]
    %v334 = vld [vmem:[%s39 + $0x48] sm:$0xff]
    %v335 = vld [vmem:[%s39 + $0x50] sm:$0xff]
    %v336 = vld [vmem:[%s39 + $0x58] sm:$0xff]
    %v337 = vld [vmem:[%s39 + $0x60] sm:$0xff]
    %v338 = vld [vmem:[%s39 + $0x68] sm:$0xff]
    %v339 = vld [vmem:[%s39 + $0x70] sm:$0xff]
    %v340 = vld [vmem:[%s39 + $0x78] sm:$0xff]
    %v341 = vld [vmem:[#allocation2] sm:$0x1]
    %v343 = vperm.slane %v341, 0
    %344 = vset.pattern.permute.xlu0 0
    %345 = vperm.xlu0 %344, %v343
    %v346 = vpop.permute.xlu0 %345
    %348 = vmatpush.msra.mxu0 %v340
    %349 = vmatpush.msra.mxu0 %v339
    %350 = vmatpush.msra.mxu0 %v338
    %351 = vmatpush.msra.mxu0 %v337
    %352 = vmatpush.msra.mxu0 %v336
    %353 = vmatpush.msra.mxu0 %v335
    %354 = vmatpush.msra.mxu0 %v334
    %355 = vmatpush.msra.mxu0 %v333
    %356 = vmatpush.msra.mxu0 %v332
    %357 = vmatpush.msra.mxu0 %v331
    %358 = vmatpush.msra.mxu0 %v330
    %359 = vmatpush.msra.mxu0 %v329
    %360 = vmatpush.msra.mxu0 %v328
    %361 = vmatpush.msra.mxu0 %v327
    %362 = vmatpush.msra.mxu0 %v326
    %363 = vmatpush.msra.mxu0 %v325
    %364 = vmatmul.f32.gmra.mxu0 %v324
    %v365 = vpop.f32.mrf.mxu0
    %v366 = vadd.f32 %v346, %v365
    %367 = vdwg.mxu0
    %v368 = vxor.u32 %v366, 2147483648
    %v369 = vmul.f32 %v368, 1.442695
    %v370 = vpow.pop %v369
    %v371 = vadd.f32 %v370, 1.0
    %v372 = vrcp.pop %v371
    %v373 = vmul.f32 %v371, %v372
    %v374 = vsub.f32 1.0, %v373
    %v375 = vmul.f32 %v372, %v374
    %v376 = vadd.f32 %v372, %v375
    %vm377 = vweird.f32 %v371
    %vm378 = vweird.f32 %v372
    %vm379 = vmor %vm377, %vm378
    %v380 = vsel %vm379, %v372, %v376
    %v381 = vand.u32 2147483647, %v371
    %vm382 = vcmp.eq.f32.partialorder %v381, 8.507059e+37
    %v383 = vand.u32 %v371, 2147483648
    %v384 = vor.u32 1.1754944e-38, %v383
    %v385 = vsel %vm382, %v384, %v380
    %v386 = vmul.f32 1.0, %v385
    %vm387 = vcmask 64512
    %v389 = vsel %vm387, %v127, 0
    %v392 = vsel %vm387, %v128, 0
    %v395 = vsel %vm387, %v129, 0
    %v398 = vsel %vm387, %v130, 0
    %v401 = vsel %vm387, %v131, 0
    %v404 = vsel %vm387, %v132, 0
    %v407 = vsel %vm387, %v133, 0
    %v410 = vsel %vm387, %v134, 0
    %412 = vmatpush.msra.mxu0 0.0
    %413 = vmatpush.msra.mxu0 0.0
    %414 = vmatpush.msra.mxu0 0.0
    %415 = vmatpush.msra.mxu0 0.0
    %416 = vmatpush.msra.mxu0 0.0
    %417 = vmatpush.msra.mxu0 0.0
    %418 = vmatpush.msra.mxu0 0.0
    %419 = vmatpush.msra.mxu0 0.0
    %420 = vmatpush.msra.mxu0 0.0
    %421 = vmatpush.msra.mxu0 0.0
    %422 = vmatpush.msra.mxu0 0.0
    %423 = vmatpush.msra.mxu0 0.0
    %424 = vmatpush.msra.mxu0 0.0
    %425 = vmatpush.msra.mxu0 0.0
    %426 = vmatpush.msra.mxu0 0.0
    %427 = vmatpush.msra.mxu0 %v125
    %428 = vmatmul.f32.gmra.mxu0 %v389
    %v429 = vpop.f32.mrf.mxu0
    %v430 = vadd.f32 0.0, %v429
    %431 = vmatmul.f32.gmra.mxu0 %v392
    %v432 = vpop.f32.mrf.mxu0
    %v433 = vadd.f32 0.0, %v432
    %434 = vmatmul.f32.gmra.mxu0 %v395
    %v435 = vpop.f32.mrf.mxu0
    %v436 = vadd.f32 0.0, %v435
    %437 = vmatmul.f32.gmra.mxu0 %v398
    %v438 = vpop.f32.mrf.mxu0
    %v439 = vadd.f32 0.0, %v438
    %440 = vmatmul.f32.gmra.mxu0 %v401
    %v441 = vpop.f32.mrf.mxu0
    %v442 = vadd.f32 0.0, %v441
    %443 = vmatmul.f32.gmra.mxu0 %v404
    %v444 = vpop.f32.mrf.mxu0
    %v445 = vadd.f32 0.0, %v444
    %446 = vmatmul.f32.gmra.mxu0 %v407
    %v447 = vpop.f32.mrf.mxu0
    %v448 = vadd.f32 0.0, %v447
    %449 = vmatmul.f32.gmra.mxu0 %v410
    %v450 = vpop.f32.mrf.mxu0
    %v451 = vadd.f32 0.0, %v450
    %452 = vdwg.mxu0
    %v454 = vsel %vm387, %v135, 0
    %v457 = vsel %vm387, %v136, 0
    %v460 = vsel %vm387, %v137, 0
    %v463 = vsel %vm387, %v138, 0
    %v466 = vsel %vm387, %v139, 0
    %v469 = vsel %vm387, %v140, 0
    %v472 = vsel %vm387, %v141, 0
    %v475 = vsel %vm387, %v142, 0
    %477 = vmatpush.msra.mxu0 0.0
    %478 = vmatpush.msra.mxu0 0.0
    %479 = vmatpush.msra.mxu0 0.0
    %480 = vmatpush.msra.mxu0 0.0
    %481 = vmatpush.msra.mxu0 0.0
    %482 = vmatpush.msra.mxu0 0.0
    %483 = vmatpush.msra.mxu0 0.0
    %484 = vmatpush.msra.mxu0 0.0
    %485 = vmatpush.msra.mxu0 0.0
    %486 = vmatpush.msra.mxu0 0.0
    %487 = vmatpush.msra.mxu0 0.0
    %488 = vmatpush.msra.mxu0 0.0
    %489 = vmatpush.msra.mxu0 0.0
    %490 = vmatpush.msra.mxu0 0.0
    %491 = vmatpush.msra.mxu0 0.0
    %492 = vmatpush.msra.mxu0 %v125
    %493 = vmatmul.f32.gmra.mxu0 %v454
    %v494 = vpop.f32.mrf.mxu0
    %v495 = vadd.f32 0.0, %v494
    %496 = vmatmul.f32.gmra.mxu0 %v457
    %v497 = vpop.f32.mrf.mxu0
    %v498 = vadd.f32 0.0, %v497
    %499 = vmatmul.f32.gmra.mxu0 %v460
    %v500 = vpop.f32.mrf.mxu0
    %v501 = vadd.f32 0.0, %v500
    %502 = vmatmul.f32.gmra.mxu0 %v463
    %v503 = vpop.f32.mrf.mxu0
    %v504 = vadd.f32 0.0, %v503
    %505 = vmatmul.f32.gmra.mxu0 %v466
    %v506 = vpop.f32.mrf.mxu0
    %v507 = vadd.f32 0.0, %v506
    %508 = vmatmul.f32.gmra.mxu0 %v469
    %v509 = vpop.f32.mrf.mxu0
    %v510 = vadd.f32 0.0, %v509
    %511 = vmatmul.f32.gmra.mxu0 %v472
    %v512 = vpop.f32.mrf.mxu0
    %v513 = vadd.f32 0.0, %v512
    %514 = vmatmul.f32.gmra.mxu0 %v475
    %v515 = vpop.f32.mrf.mxu0
    %v516 = vadd.f32 0.0, %v515
    %517 = vdwg.mxu0
    %v518 = vsub.f32 %v430, %v495
    %v519 = vsub.f32 %v433, %v498
    %v520 = vsub.f32 %v436, %v501
    %v521 = vsub.f32 %v439, %v504
    %v522 = vsub.f32 %v442, %v507
    %v523 = vsub.f32 %v445, %v510
    %v524 = vsub.f32 %v448, %v513
    %v525 = vsub.f32 %v451, %v516
    %v526 = vmul.f32 %v518, %v518
    %v527 = vmul.f32 %v519, %v519
    %v528 = vmul.f32 %v520, %v520
    %v529 = vmul.f32 %v521, %v521
    %v530 = vmul.f32 %v522, %v522
    %v531 = vmul.f32 %v523, %v523
    %v532 = vmul.f32 %v524, %v524
    %v533 = vmul.f32 %v525, %v525
    %vm534 = vcmask 23552
    %v535 = vsel %vm534, %v526, 0.0
    %536 = vadd.xlane.f32.xlu0 %v535
    %v537 = vpop.xlane.xlu0 %536
    %v538 = vsel %vm534, %v527, 0.0
    %539 = vadd.xlane.f32.xlu0 %v538
    %v540 = vpop.xlane.xlu0 %539
    %v541 = vsel %vm534, %v528, 0.0
    %542 = vadd.xlane.f32.xlu0 %v541
    %v543 = vpop.xlane.xlu0 %542
    %v544 = vsel %vm534, %v529, 0.0
    %545 = vadd.xlane.f32.xlu0 %v544
    %v546 = vpop.xlane.xlu0 %545
    %v547 = vsel %vm534, %v530, 0.0
    %548 = vadd.xlane.f32.xlu0 %v547
    %v549 = vpop.xlane.xlu0 %548
    %v550 = vsel %vm534, %v531, 0.0
    %551 = vadd.xlane.f32.xlu0 %v550
    %v552 = vpop.xlane.xlu0 %551
    %v553 = vsel %vm534, %v532, 0.0
    %554 = vadd.xlane.f32.xlu0 %v553
    %v555 = vpop.xlane.xlu0 %554
    %v556 = vsel %vm534, %v533, 0.0
    %557 = vadd.xlane.f32.xlu0 %v556
    %v558 = vpop.xlane.xlu0 %557
    %v559 = vrsqrt.pop %v537
    %v560 = vmul.f32 %v559, %v537
    %v561 = vmul.f32 %v560, %v559
    %v562 = vmul.f32 0.5, %v561
    %v563 = vsub.f32 1.5, %v562
    %v564 = vmul.f32 %v559, %v563
    %v565 = vmul.f32 %v537, %v564
    %vm566 = vcmp.eq.f32.partialorder %v537, inf
    %v567 = vsel %vm566, %v537, %v565
    %vm568 = vcmp.eq.f32.partialorder %v537, 0.0
    %v569 = vand.u32 %v537, 2147483648
    %v570 = vsel %vm568, %v569, %v567
    %v571 = vrsqrt.pop %v540
    %v572 = vmul.f32 %v571, %v540
    %v573 = vmul.f32 %v572, %v571
    %v574 = vmul.f32 0.5, %v573
    %v575 = vsub.f32 1.5, %v574
    %v576 = vmul.f32 %v571, %v575
    %v577 = vmul.f32 %v540, %v576
    %vm578 = vcmp.eq.f32.partialorder %v540, inf
    %v579 = vsel %vm578, %v540, %v577
    %vm580 = vcmp.eq.f32.partialorder %v540, 0.0
    %v581 = vand.u32 %v540, 2147483648
    %v582 = vsel %vm580, %v581, %v579
    %v583 = vrsqrt.pop %v543
    %v584 = vmul.f32 %v583, %v543
    %v585 = vmul.f32 %v584, %v583
    %v586 = vmul.f32 0.5, %v585
    %v587 = vsub.f32 1.5, %v586
    %v588 = vmul.f32 %v583, %v587
    %v589 = vmul.f32 %v543, %v588
    %vm590 = vcmp.eq.f32.partialorder %v543, inf
    %v591 = vsel %vm590, %v543, %v589
    %vm592 = vcmp.eq.f32.partialorder %v543, 0.0
    %v593 = vand.u32 %v543, 2147483648
    %v594 = vsel %vm592, %v593, %v591
    %v595 = vrsqrt.pop %v546
    %v596 = vmul.f32 %v595, %v546
    %v597 = vmul.f32 %v596, %v595
    %v598 = vmul.f32 0.5, %v597
    %v599 = vsub.f32 1.5, %v598
    %v600 = vmul.f32 %v595, %v599
    %v601 = vmul.f32 %v546, %v600
    %vm602 = vcmp.eq.f32.partialorder %v546, inf
    %v603 = vsel %vm602, %v546, %v601
    %vm604 = vcmp.eq.f32.partialorder %v546, 0.0
    %v605 = vand.u32 %v546, 2147483648
    %v606 = vsel %vm604, %v605, %v603
    %v607 = vrsqrt.pop %v549
    %v608 = vmul.f32 %v607, %v549
    %v609 = vmul.f32 %v608, %v607
    %v610 = vmul.f32 0.5, %v609
    %v611 = vsub.f32 1.5, %v610
    %v612 = vmul.f32 %v607, %v611
    %v613 = vmul.f32 %v549, %v612
    %vm614 = vcmp.eq.f32.partialorder %v549, inf
    %v615 = vsel %vm614, %v549, %v613
    %vm616 = vcmp.eq.f32.partialorder %v549, 0.0
    %v617 = vand.u32 %v549, 2147483648
    %v618 = vsel %vm616, %v617, %v615
    %v619 = vrsqrt.pop %v552
    %v620 = vmul.f32 %v619, %v552
    %v621 = vmul.f32 %v620, %v619
    %v622 = vmul.f32 0.5, %v621
    %v623 = vsub.f32 1.5, %v622
    %v624 = vmul.f32 %v619, %v623
    %v625 = vmul.f32 %v552, %v624
    %vm626 = vcmp.eq.f32.partialorder %v552, inf
    %v627 = vsel %vm626, %v552, %v625
    %vm628 = vcmp.eq.f32.partialorder %v552, 0.0
    %v629 = vand.u32 %v552, 2147483648
    %v630 = vsel %vm628, %v629, %v627
    %v631 = vrsqrt.pop %v555
    %v632 = vmul.f32 %v631, %v555
    %v633 = vmul.f32 %v632, %v631
    %v634 = vmul.f32 0.5, %v633
    %v635 = vsub.f32 1.5, %v634
    %v636 = vmul.f32 %v631, %v635
    %v637 = vmul.f32 %v555, %v636
    %vm638 = vcmp.eq.f32.partialorder %v555, inf
    %v639 = vsel %vm638, %v555, %v637
    %vm640 = vcmp.eq.f32.partialorder %v555, 0.0
    %v641 = vand.u32 %v555, 2147483648
    %v642 = vsel %vm640, %v641, %v639
    %v643 = vrsqrt.pop %v558
    %v644 = vmul.f32 %v643, %v558
    %v645 = vmul.f32 %v644, %v643
    %v646 = vmul.f32 0.5, %v645
    %v647 = vsub.f32 1.5, %v646
    %v648 = vmul.f32 %v643, %v647
    %v649 = vmul.f32 %v558, %v648
    %vm650 = vcmp.eq.f32.partialorder %v558, inf
    %v651 = vsel %vm650, %v558, %v649
    %vm652 = vcmp.eq.f32.partialorder %v558, 0.0
    %v653 = vand.u32 %v558, 2147483648
    %v654 = vsel %vm652, %v653, %v651
    %v655 = vadd.f32 %v570, 1e-08
    %v656 = vadd.f32 %v582, 1e-08
    %v657 = vadd.f32 %v594, 1e-08
    %v658 = vadd.f32 %v606, 1e-08
    %v659 = vadd.f32 %v618, 1e-08
    %v660 = vadd.f32 %v630, 1e-08
    %v661 = vadd.f32 %v642, 1e-08
    %v662 = vadd.f32 %v654, 1e-08
    %v663 = vmax.f32 %v655, 1e-08
    %v664 = vmax.f32 %v656, 1e-08
    %v665 = vmax.f32 %v657, 1e-08
    %v666 = vmax.f32 %v658, 1e-08
    %v667 = vmax.f32 %v659, 1e-08
    %v668 = vmax.f32 %v660, 1e-08
    %v669 = vmax.f32 %v661, 1e-08
    %v670 = vmax.f32 %v662, 1e-08
    %v671 = vmin.f32 %v663, 1e+08
    %v672 = vmin.f32 %v664, 1e+08
    %v673 = vmin.f32 %v665, 1e+08
    %v674 = vmin.f32 %v666, 1e+08
    %v675 = vmin.f32 %v667, 1e+08
    %v676 = vmin.f32 %v668, 1e+08
    %v677 = vmin.f32 %v669, 1e+08
    %v678 = vmin.f32 %v670, 1e+08
    %v679 = vmul.f32 %v430, %v495
    %v680 = vmul.f32 %v433, %v498
    %v681 = vmul.f32 %v436, %v501
    %v682 = vmul.f32 %v439, %v504
    %v683 = vmul.f32 %v442, %v507
    %v684 = vmul.f32 %v445, %v510
    %v685 = vmul.f32 %v448, %v513
    %v686 = vmul.f32 %v451, %v516
    %v687 = vsel %vm534, %v679, 0.0
    %688 = vadd.xlane.f32.xlu0 %v687
    %v689 = vpop.xlane.xlu0 %688
    %v690 = vsel %vm534, %v680, 0.0
    %691 = vadd.xlane.f32.xlu0 %v690
    %v692 = vpop.xlane.xlu0 %691
    %v693 = vsel %vm534, %v681, 0.0
    %694 = vadd.xlane.f32.xlu0 %v693
    %v695 = vpop.xlane.xlu0 %694
    %v696 = vsel %vm534, %v682, 0.0
    %697 = vadd.xlane.f32.xlu0 %v696
    %v698 = vpop.xlane.xlu0 %697
    %v699 = vsel %vm534, %v683, 0.0
    %700 = vadd.xlane.f32.xlu0 %v699
    %v701 = vpop.xlane.xlu0 %700
    %v702 = vsel %vm534, %v684, 0.0
    %703 = vadd.xlane.f32.xlu0 %v702
    %v704 = vpop.xlane.xlu0 %703
    %v705 = vsel %vm534, %v685, 0.0
    %706 = vadd.xlane.f32.xlu0 %v705
    %v707 = vpop.xlane.xlu0 %706
    %v708 = vsel %vm534, %v686, 0.0
    %709 = vadd.xlane.f32.xlu0 %v708
    %v710 = vpop.xlane.xlu0 %709
    %v711 = vmax.f32 %v689, -1e+08
    %v712 = vmax.f32 %v692, -1e+08
    %v713 = vmax.f32 %v695, -1e+08
    %v714 = vmax.f32 %v698, -1e+08
    %v715 = vmax.f32 %v701, -1e+08
    %v716 = vmax.f32 %v704, -1e+08
    %v717 = vmax.f32 %v707, -1e+08
    %v718 = vmax.f32 %v710, -1e+08
    %v719 = vmin.f32 %v711, 1e+08
    %v720 = vmin.f32 %v712, 1e+08
    %v721 = vmin.f32 %v713, 1e+08
    %v722 = vmin.f32 %v714, 1e+08
    %v723 = vmin.f32 %v715, 1e+08
    %v724 = vmin.f32 %v716, 1e+08
    %v725 = vmin.f32 %v717, 1e+08
    %v726 = vmin.f32 %v718, 1e+08
    %v727 = vld [vmem:[%s15] sm:$0x1]
    %v728 = vsub.f32 0.0, %v727
    %v729 = vld [vmem:[%s13] sm:$0x1]
    %v731 = vperm.slane %v729, 0
    %v733 = vsub.f32 %v671, %v731
    %v734 = vsub.f32 %v672, %v731
    %v735 = vsub.f32 %v673, %v731
    %v736 = vsub.f32 %v674, %v731
    %v737 = vsub.f32 %v675, %v731
    %v738 = vsub.f32 %v676, %v731
    %v739 = vsub.f32 %v677, %v731
    %v740 = vsub.f32 %v678, %v731
    %v741 = vmul.f32 %v733, %v733
    %v742 = vmul.f32 %v734, %v734
    %v743 = vmul.f32 %v735, %v735
    %v744 = vmul.f32 %v736, %v736
    %v745 = vmul.f32 %v737, %v737
    %v746 = vmul.f32 %v738, %v738
    %v747 = vmul.f32 %v739, %v739
    %v748 = vmul.f32 %v740, %v740
    %v750 = vperm.slane %v728, 0
    %v752 = vmul.f32 %v750, %v741
    %v753 = vmul.f32 %v750, %v742
    %v754 = vmul.f32 %v750, %v743
    %v755 = vmul.f32 %v750, %v744
    %v756 = vmul.f32 %v750, %v745
    %v757 = vmul.f32 %v750, %v746
    %v758 = vmul.f32 %v750, %v747
    %v759 = vmul.f32 %v750, %v748
    %v760 = vmul.f32 %v752, 1.442695
    %v761 = vpow.pop %v760
    %v762 = vmul.f32 %v753, 1.442695
    %v763 = vpow.pop %v762
    %v764 = vmul.f32 %v754, 1.442695
    %v765 = vpow.pop %v764
    %v766 = vmul.f32 %v755, 1.442695
    %v767 = vpow.pop %v766
    %v768 = vmul.f32 %v756, 1.442695
    %v769 = vpow.pop %v768
    %v770 = vmul.f32 %v757, 1.442695
    %v771 = vpow.pop %v770
    %v772 = vmul.f32 %v758, 1.442695
    %v773 = vpow.pop %v772
    %v774 = vmul.f32 %v759, 1.442695
    %v775 = vpow.pop %v774
    %vm776 = vcmp.le.f32.partialorder %v671, 10.0
    %vm777 = vcmp.le.f32.partialorder %v672, 10.0
    %vm778 = vcmp.le.f32.partialorder %v673, 10.0
    %vm779 = vcmp.le.f32.partialorder %v674, 10.0
    %vm780 = vcmp.le.f32.partialorder %v675, 10.0
    %vm781 = vcmp.le.f32.partialorder %v676, 10.0
    %vm782 = vcmp.le.f32.partialorder %v677, 10.0
    %vm783 = vcmp.le.f32.partialorder %v678, 10.0
    %v784 = vsel %vm776, 1, 0
    %v785 = vsel %vm777, 1, 0
    %v786 = vsel %vm778, 1, 0
    %v787 = vsel %vm779, 1, 0
    %v788 = vsel %vm780, 1, 0
    %v789 = vsel %vm781, 1, 0
    %v790 = vsel %vm782, 1, 0
    %v791 = vsel %vm783, 1, 0
    %v792 = vcvt.s32.f32 %v784
    %v793 = vcvt.s32.f32 %v785
    %v794 = vcvt.s32.f32 %v786
    %v795 = vcvt.s32.f32 %v787
    %v796 = vcvt.s32.f32 %v788
    %v797 = vcvt.s32.f32 %v789
    %v798 = vcvt.s32.f32 %v790
    %v799 = vcvt.s32.f32 %v791
    %v800 = vmul.f32 %v761, %v792
    %v801 = vmul.f32 %v763, %v793
    %v802 = vmul.f32 %v765, %v794
    %v803 = vmul.f32 %v767, %v795
    %v804 = vmul.f32 %v769, %v796
    %v805 = vmul.f32 %v771, %v797
    %v806 = vmul.f32 %v773, %v798
    %v807 = vmul.f32 %v775, %v799
    %v808 = vld [vmem:[%s21] sm:$0xff]
    %v809 = vld [vmem:[%s21 + $0x8] sm:$0xff]
    %v810 = vld [vmem:[%s23] sm:$0x1]
    %v812 = vperm.slane %v810, 0
    %v814 = vmul.f32 %v719, %v812
    %v815 = vmul.f32 %v720, %v812
    %v816 = vmul.f32 %v721, %v812
    %v817 = vmul.f32 %v722, %v812
    %v818 = vmul.f32 %v723, %v812
    %v819 = vmul.f32 %v724, %v812
    %v820 = vmul.f32 %v725, %v812
    %v821 = vmul.f32 %v726, %v812
    %vm822 = vcmask 130048
    %v824 = vsel %vm822, %v800, 0
    %v827 = vsel %vm822, %v801, 0
    %v830 = vsel %vm822, %v802, 0
    %v833 = vsel %vm822, %v803, 0
    %v836 = vsel %vm822, %v804, 0
    %v839 = vsel %vm822, %v805, 0
    %v842 = vsel %vm822, %v806, 0
    %v845 = vsel %vm822, %v807, 0
    %847 = vmatpush.msra.mxu0 0.0
    %848 = vmatpush.msra.mxu0 0.0
    %849 = vmatpush.msra.mxu0 0.0
    %850 = vmatpush.msra.mxu0 0.0
    %851 = vmatpush.msra.mxu0 0.0
    %852 = vmatpush.msra.mxu0 0.0
    %853 = vmatpush.msra.mxu0 0.0
    %854 = vmatpush.msra.mxu0 0.0
    %855 = vmatpush.msra.mxu0 0.0
    %856 = vmatpush.msra.mxu0 0.0
    %857 = vmatpush.msra.mxu0 0.0
    %858 = vmatpush.msra.mxu0 0.0
    %859 = vmatpush.msra.mxu0 0.0
    %860 = vmatpush.msra.mxu0 0.0
    %861 = vmatpush.msra.mxu0 %v809
    %862 = vmatpush.msra.mxu0 %v808
    %863 = vmatmul.f32.gmra.mxu0 %v824
    %v864 = vpop.f32.mrf.mxu0
    %v865 = vadd.f32 %v814, %v864
    %866 = vmatmul.f32.gmra.mxu0 %v827
    %v867 = vpop.f32.mrf.mxu0
    %v868 = vadd.f32 %v815, %v867
    %869 = vmatmul.f32.gmra.mxu0 %v830
    %v870 = vpop.f32.mrf.mxu0
    %v871 = vadd.f32 %v816, %v870
    %872 = vmatmul.f32.gmra.mxu0 %v833
    %v873 = vpop.f32.mrf.mxu0
    %v874 = vadd.f32 %v817, %v873
    %875 = vmatmul.f32.gmra.mxu0 %v836
    %v876 = vpop.f32.mrf.mxu0
    %v877 = vadd.f32 %v818, %v876
    %878 = vmatmul.f32.gmra.mxu0 %v839
    %v879 = vpop.f32.mrf.mxu0
    %v880 = vadd.f32 %v819, %v879
    %881 = vmatmul.f32.gmra.mxu0 %v842
    %v882 = vpop.f32.mrf.mxu0
    %v883 = vadd.f32 %v820, %v882
    %884 = vmatmul.f32.gmra.mxu0 %v845
    %v885 = vpop.f32.mrf.mxu0
    %v886 = vadd.f32 %v821, %v885
    %887 = vdwg.mxu0
    %v888 = vld [vmem:[%s25] sm:$0x1]
    %v890 = vperm.slane %v888, 0
    %v892 = vadd.f32 %v865, %v890
    %v893 = vadd.f32 %v868, %v890
    %v894 = vadd.f32 %v871, %v890
    %v895 = vadd.f32 %v874, %v890
    %v896 = vadd.f32 %v877, %v890
    %v897 = vadd.f32 %v880, %v890
    %v898 = vadd.f32 %v883, %v890
    %v899 = vadd.f32 %v886, %v890
    %900 = vmatpush.msra.mxu0 0.0
    %901 = vmatpush.msra.mxu0 0.0
    %902 = vmatpush.msra.mxu0 0.0
    %903 = vmatpush.msra.mxu0 0.0
    %904 = vmatpush.msra.mxu0 0.0
    %905 = vmatpush.msra.mxu0 0.0
    %906 = vmatpush.msra.mxu0 0.0
    %907 = vmatpush.msra.mxu0 0.0
    %908 = vmatpush.msra.mxu0 0.0
    %909 = vmatpush.msra.mxu0 0.0
    %910 = vmatpush.msra.mxu0 0.0
    %911 = vmatpush.msra.mxu0 0.0
    %912 = vmatpush.msra.mxu0 0.0
    %913 = vmatpush.msra.mxu0 0.0
    %914 = vmatpush.msra.mxu0 0.0
    %915 = vmatpush.msra.mxu0 %v272
    %916 = vmatmul.f32.gmra.mxu0 %v454
    %v917 = vpop.f32.mrf.mxu0
    %v918 = vadd.f32 0.0, %v917
    %919 = vmatmul.f32.gmra.mxu0 %v457
    %v920 = vpop.f32.mrf.mxu0
    %v921 = vadd.f32 0.0, %v920
    %922 = vmatmul.f32.gmra.mxu0 %v460
    %v923 = vpop.f32.mrf.mxu0
    %v924 = vadd.f32 0.0, %v923
    %925 = vmatmul.f32.gmra.mxu0 %v463
    %v926 = vpop.f32.mrf.mxu0
    %v927 = vadd.f32 0.0, %v926
    %928 = vmatmul.f32.gmra.mxu0 %v466
    %v929 = vpop.f32.mrf.mxu0
    %v930 = vadd.f32 0.0, %v929
    %931 = vmatmul.f32.gmra.mxu0 %v469
    %v932 = vpop.f32.mrf.mxu0
    %v933 = vadd.f32 0.0, %v932
    %934 = vmatmul.f32.gmra.mxu0 %v472
    %v935 = vpop.f32.mrf.mxu0
    %v936 = vadd.f32 0.0, %v935
    %937 = vmatmul.f32.gmra.mxu0 %v475
    %v938 = vpop.f32.mrf.mxu0
    %v939 = vadd.f32 0.0, %v938
    %940 = vdwg.mxu0
    %941 = vmatpush.msra.mxu0 0.0
    %942 = vmatpush.msra.mxu0 0.0
    %943 = vmatpush.msra.mxu0 0.0
    %944 = vmatpush.msra.mxu0 0.0
    %945 = vmatpush.msra.mxu0 0.0
    %946 = vmatpush.msra.mxu0 0.0
    %947 = vmatpush.msra.mxu0 0.0
    %948 = vmatpush.msra.mxu0 0.0
    %949 = vmatpush.msra.mxu0 0.0
    %950 = vmatpush.msra.mxu0 0.0
    %951 = vmatpush.msra.mxu0 0.0
    %952 = vmatpush.msra.mxu0 0.0
    %953 = vmatpush.msra.mxu0 0.0
    %954 = vmatpush.msra.mxu0 0.0
    %955 = vmatpush.msra.mxu0 0.0
    %956 = vmatpush.msra.mxu0 %v245
    %957 = vmatmul.f32.gmra.mxu0 %v389
    %v958 = vpop.f32.mrf.mxu0
    %v959 = vadd.f32 %v918, %v958
    %960 = vmatmul.f32.gmra.mxu0 %v392
    %v961 = vpop.f32.mrf.mxu0
    %v962 = vadd.f32 %v921, %v961
    %963 = vmatmul.f32.gmra.mxu0 %v395
    %v964 = vpop.f32.mrf.mxu0
    %v965 = vadd.f32 %v924, %v964
    %966 = vmatmul.f32.gmra.mxu0 %v398
    %v967 = vpop.f32.mrf.mxu0
    %v968 = vadd.f32 %v927, %v967
    %969 = vmatmul.f32.gmra.mxu0 %v401
    %v970 = vpop.f32.mrf.mxu0
    %v971 = vadd.f32 %v930, %v970
    %972 = vmatmul.f32.gmra.mxu0 %v404
    %v973 = vpop.f32.mrf.mxu0
    %v974 = vadd.f32 %v933, %v973
    %975 = vmatmul.f32.gmra.mxu0 %v407
    %v976 = vpop.f32.mrf.mxu0
    %v977 = vadd.f32 %v936, %v976
    %978 = vmatmul.f32.gmra.mxu0 %v410
    %v979 = vpop.f32.mrf.mxu0
    %v980 = vadd.f32 %v939, %v979
    %981 = vdwg.mxu0
    %v982 = vadd.f32 %v959, %v892
    %v983 = vadd.f32 %v962, %v893
    %v984 = vadd.f32 %v965, %v894
    %v985 = vadd.f32 %v968, %v895
    %v986 = vadd.f32 %v971, %v896
    %v987 = vadd.f32 %v974, %v897
    %v988 = vadd.f32 %v977, %v898
    %v989 = vadd.f32 %v980, %v899
    %v990 = vxor.u32 %v982, 2147483648
    %v991 = vxor.u32 %v983, 2147483648
    %v992 = vxor.u32 %v984, 2147483648
    %v993 = vxor.u32 %v985, 2147483648
    %v994 = vxor.u32 %v986, 2147483648
    %v995 = vxor.u32 %v987, 2147483648
    %v996 = vxor.u32 %v988, 2147483648
    %v997 = vxor.u32 %v989, 2147483648
    %v998 = vmul.f32 %v990, 1.442695
    %v999 = vpow.pop %v998
    %v1000 = vmul.f32 %v991, 1.442695
    %v1001 = vpow.pop %v1000
    %v1002 = vmul.f32 %v992, 1.442695
    %v1003 = vpow.pop %v1002
    %v1004 = vmul.f32 %v993, 1.442695
    %v1005 = vpow.pop %v1004
    %v1006 = vmul.f32 %v994, 1.442695
    %v1007 = vpow.pop %v1006
    %v1008 = vmul.f32 %v995, 1.442695
    %v1009 = vpow.pop %v1008
    %v1010 = vmul.f32 %v996, 1.442695
    %v1011 = vpow.pop %v1010
    %v1012 = vmul.f32 %v997, 1.442695
    %v1013 = vpow.pop %v1012
    %v1014 = vadd.f32 %v999, 1.0
    %v1015 = vadd.f32 %v1001, 1.0
    %v1016 = vadd.f32 %v1003, 1.0
    %v1017 = vadd.f32 %v1005, 1.0
    %v1018 = vadd.f32 %v1007, 1.0
    %v1019 = vadd.f32 %v1009, 1.0
    %v1020 = vadd.f32 %v1011, 1.0
    %v1021 = vadd.f32 %v1013, 1.0
    %v1022 = vrcp.pop %v1014
    %v1023 = vmul.f32 %v1014, %v1022
    %v1024 = vsub.f32 1.0, %v1023
    %v1025 = vmul.f32 %v1022, %v1024
    %v1026 = vadd.f32 %v1022, %v1025
    %vm1027 = vweird.f32 %v1014
    %vm1028 = vweird.f32 %v1022
    %vm1029 = vmor %vm1027, %vm1028
    %v1030 = vsel %vm1029, %v1022, %v1026
    %v1031 = vand.u32 2147483647, %v1014
    %vm1032 = vcmp.eq.f32.partialorder %v1031, 8.507059e+37
    %v1033 = vand.u32 %v1014, 2147483648
    %v1034 = vor.u32 1.1754944e-38, %v1033
    %v1035 = vsel %vm1032, %v1034, %v1030
    %v1036 = vmul.f32 1.0, %v1035
    %v1037 = vrcp.pop %v1015
    %v1038 = vmul.f32 %v1015, %v1037
    %v1039 = vsub.f32 1.0, %v1038
    %v1040 = vmul.f32 %v1037, %v1039
    %v1041 = vadd.f32 %v1037, %v1040
    %vm1042 = vweird.f32 %v1015
    %vm1043 = vweird.f32 %v1037
    %vm1044 = vmor %vm1042, %vm1043
    %v1045 = vsel %vm1044, %v1037, %v1041
    %v1046 = vand.u32 2147483647, %v1015
    %vm1047 = vcmp.eq.f32.partialorder %v1046, 8.507059e+37
    %v1048 = vand.u32 %v1015, 2147483648
    %v1049 = vor.u32 1.1754944e-38, %v1048
    %v1050 = vsel %vm1047, %v1049, %v1045
    %v1051 = vmul.f32 1.0, %v1050
    %v1052 = vrcp.pop %v1016
    %v1053 = vmul.f32 %v1016, %v1052
    %v1054 = vsub.f32 1.0, %v1053
    %v1055 = vmul.f32 %v1052, %v1054
    %v1056 = vadd.f32 %v1052, %v1055
    %vm1057 = vweird.f32 %v1016
    %vm1058 = vweird.f32 %v1052
    %vm1059 = vmor %vm1057, %vm1058
    %v1060 = vsel %vm1059, %v1052, %v1056
    %v1061 = vand.u32 2147483647, %v1016
    %vm1062 = vcmp.eq.f32.partialorder %v1061, 8.507059e+37
    %v1063 = vand.u32 %v1016, 2147483648
    %v1064 = vor.u32 1.1754944e-38, %v1063
    %v1065 = vsel %vm1062, %v1064, %v1060
    %v1066 = vmul.f32 1.0, %v1065
    %v1067 = vrcp.pop %v1017
    %v1068 = vmul.f32 %v1017, %v1067
    %v1069 = vsub.f32 1.0, %v1068
    %v1070 = vmul.f32 %v1067, %v1069
    %v1071 = vadd.f32 %v1067, %v1070
    %vm1072 = vweird.f32 %v1017
    %vm1073 = vweird.f32 %v1067
    %vm1074 = vmor %vm1072, %vm1073
    %v1075 = vsel %vm1074, %v1067, %v1071
    %v1076 = vand.u32 2147483647, %v1017
    %vm1077 = vcmp.eq.f32.partialorder %v1076, 8.507059e+37
    %v1078 = vand.u32 %v1017, 2147483648
    %v1079 = vor.u32 1.1754944e-38, %v1078
    %v1080 = vsel %vm1077, %v1079, %v1075
    %v1081 = vmul.f32 1.0, %v1080
    %v1082 = vrcp.pop %v1018
    %v1083 = vmul.f32 %v1018, %v1082
    %v1084 = vsub.f32 1.0, %v1083
    %v1085 = vmul.f32 %v1082, %v1084
    %v1086 = vadd.f32 %v1082, %v1085
    %vm1087 = vweird.f32 %v1018
    %vm1088 = vweird.f32 %v1082
    %vm1089 = vmor %vm1087, %vm1088
    %v1090 = vsel %vm1089, %v1082, %v1086
    %v1091 = vand.u32 2147483647, %v1018
    %vm1092 = vcmp.eq.f32.partialorder %v1091, 8.507059e+37
    %v1093 = vand.u32 %v1018, 2147483648
    %v1094 = vor.u32 1.1754944e-38, %v1093
    %v1095 = vsel %vm1092, %v1094, %v1090
    %v1096 = vmul.f32 1.0, %v1095
    %v1097 = vrcp.pop %v1019
    %v1098 = vmul.f32 %v1019, %v1097
    %v1099 = vsub.f32 1.0, %v1098
    %v1100 = vmul.f32 %v1097, %v1099
    %v1101 = vadd.f32 %v1097, %v1100
    %vm1102 = vweird.f32 %v1019
    %vm1103 = vweird.f32 %v1097
    %vm1104 = vmor %vm1102, %vm1103
    %v1105 = vsel %vm1104, %v1097, %v1101
    %v1106 = vand.u32 2147483647, %v1019
    %vm1107 = vcmp.eq.f32.partialorder %v1106, 8.507059e+37
    %v1108 = vand.u32 %v1019, 2147483648
    %v1109 = vor.u32 1.1754944e-38, %v1108
    %v1110 = vsel %vm1107, %v1109, %v1105
    %v1111 = vmul.f32 1.0, %v1110
    %v1112 = vrcp.pop %v1020
    %v1113 = vmul.f32 %v1020, %v1112
    %v1114 = vsub.f32 1.0, %v1113
    %v1115 = vmul.f32 %v1112, %v1114
    %v1116 = vadd.f32 %v1112, %v1115
    %vm1117 = vweird.f32 %v1020
    %vm1118 = vweird.f32 %v1112
    %vm1119 = vmor %vm1117, %vm1118
    %v1120 = vsel %vm1119, %v1112, %v1116
    %v1121 = vand.u32 2147483647, %v1020
    %vm1122 = vcmp.eq.f32.partialorder %v1121, 8.507059e+37
    %v1123 = vand.u32 %v1020, 2147483648
    %v1124 = vor.u32 1.1754944e-38, %v1123
    %v1125 = vsel %vm1122, %v1124, %v1120
    %v1126 = vmul.f32 1.0, %v1125
    %v1127 = vrcp.pop %v1021
    %v1128 = vmul.f32 %v1021, %v1127
    %v1129 = vsub.f32 1.0, %v1128
    %v1130 = vmul.f32 %v1127, %v1129
    %v1131 = vadd.f32 %v1127, %v1130
    %vm1132 = vweird.f32 %v1021
    %vm1133 = vweird.f32 %v1127
    %vm1134 = vmor %vm1132, %vm1133
    %v1135 = vsel %vm1134, %v1127, %v1131
    %v1136 = vand.u32 2147483647, %v1021
    %vm1137 = vcmp.eq.f32.partialorder %v1136, 8.507059e+37
    %v1138 = vand.u32 %v1021, 2147483648
    %v1139 = vor.u32 1.1754944e-38, %v1138
    %v1140 = vsel %vm1137, %v1139, %v1135
    %v1141 = vmul.f32 1.0, %v1140
    %v1142 = vmul.f32 %v982, %v1036
    %v1143 = vmul.f32 %v983, %v1051
    %v1144 = vmul.f32 %v984, %v1066
    %v1145 = vmul.f32 %v985, %v1081
    %v1146 = vmul.f32 %v986, %v1096
    %v1147 = vmul.f32 %v987, %v1111
    %v1148 = vmul.f32 %v988, %v1126
    %v1149 = vmul.f32 %v989, %v1141
    %v1150 = vld [vmem:[%s27] sm:$0xff]
    %v1151 = vld [vmem:[%s27 + $0x8] sm:$0xff]
    %v1152 = vld [vmem:[%s27 + $0x10] sm:$0xff]
    %v1153 = vld [vmem:[%s27 + $0x18] sm:$0xff]
    %v1154 = vld [vmem:[%s27 + $0x20] sm:$0xff]
    %v1155 = vld [vmem:[%s27 + $0x28] sm:$0xff]
    %v1156 = vld [vmem:[%s27 + $0x30] sm:$0xff]
    %v1157 = vld [vmem:[%s27 + $0x38] sm:$0xff]
    %v1158 = vld [vmem:[%s27 + $0x40] sm:$0xff]
    %v1159 = vld [vmem:[%s27 + $0x48] sm:$0xff]
    %v1160 = vld [vmem:[%s27 + $0x50] sm:$0xff]
    %v1161 = vld [vmem:[%s27 + $0x58] sm:$0xff]
    %v1162 = vld [vmem:[%s27 + $0x60] sm:$0xff]
    %v1163 = vld [vmem:[%s27 + $0x68] sm:$0xff]
    %v1164 = vld [vmem:[%s27 + $0x70] sm:$0xff]
    %v1165 = vld [vmem:[%s27 + $0x78] sm:$0xff]
    %v1166 = vld [vmem:[%s29] sm:$0x1]
    %v1168 = vperm.slane %v1166, 0
    %1170 = vmatpush.msra.mxu0 %v1165
    %1171 = vmatpush.msra.mxu0 %v1164
    %1172 = vmatpush.msra.mxu0 %v1163
    %1173 = vmatpush.msra.mxu0 %v1162
    %1174 = vmatpush.msra.mxu0 %v1161
    %1175 = vmatpush.msra.mxu0 %v1160
    %1176 = vmatpush.msra.mxu0 %v1159
    %1177 = vmatpush.msra.mxu0 %v1158
    %1178 = vmatpush.msra.mxu0 %v1157
    %1179 = vmatpush.msra.mxu0 %v1156
    %1180 = vmatpush.msra.mxu0 %v1155
    %1181 = vmatpush.msra.mxu0 %v1154
    %1182 = vmatpush.msra.mxu0 %v1153
    %1183 = vmatpush.msra.mxu0 %v1152
    %1184 = vmatpush.msra.mxu0 %v1151
    %1185 = vmatpush.msra.mxu0 %v1150
    %1186 = vmatmul.f32.gmra.mxu0 %v1142
    %v1187 = vpop.f32.mrf.mxu0
    %v1188 = vadd.f32 %v1168, %v1187
    %1189 = vmatmul.f32.gmra.mxu0 %v1143
    %v1190 = vpop.f32.mrf.mxu0
    %v1191 = vadd.f32 %v1168, %v1190
    %1192 = vmatmul.f32.gmra.mxu0 %v1144
    %v1193 = vpop.f32.mrf.mxu0
    %v1194 = vadd.f32 %v1168, %v1193
    %1195 = vmatmul.f32.gmra.mxu0 %v1145
    %v1196 = vpop.f32.mrf.mxu0
    %v1197 = vadd.f32 %v1168, %v1196
    %1198 = vmatmul.f32.gmra.mxu0 %v1146
    %v1199 = vpop.f32.mrf.mxu0
    %v1200 = vadd.f32 %v1168, %v1199
    %1201 = vmatmul.f32.gmra.mxu0 %v1147
    %v1202 = vpop.f32.mrf.mxu0
    %v1203 = vadd.f32 %v1168, %v1202
    %1204 = vmatmul.f32.gmra.mxu0 %v1148
    %v1205 = vpop.f32.mrf.mxu0
    %v1206 = vadd.f32 %v1168, %v1205
    %1207 = vmatmul.f32.gmra.mxu0 %v1149
    %v1208 = vpop.f32.mrf.mxu0
    %v1209 = vadd.f32 %v1168, %v1208
    %1210 = vdwg.mxu0
    %v1211 = vxor.u32 %v1188, 2147483648
    %v1212 = vxor.u32 %v1191, 2147483648
    %v1213 = vxor.u32 %v1194, 2147483648
    %v1214 = vxor.u32 %v1197, 2147483648
    %v1215 = vxor.u32 %v1200, 2147483648
    %v1216 = vxor.u32 %v1203, 2147483648
    %v1217 = vxor.u32 %v1206, 2147483648
    %v1218 = vxor.u32 %v1209, 2147483648
    %v1219 = vmul.f32 %v1211, 1.442695
    %v1220 = vpow.pop %v1219
    %v1221 = vmul.f32 %v1212, 1.442695
    %v1222 = vpow.pop %v1221
    %v1223 = vmul.f32 %v1213, 1.442695
    %v1224 = vpow.pop %v1223
    %v1225 = vmul.f32 %v1214, 1.442695
    %v1226 = vpow.pop %v1225
    %v1227 = vmul.f32 %v1215, 1.442695
    %v1228 = vpow.pop %v1227
    %v1229 = vmul.f32 %v1216, 1.442695
    %v1230 = vpow.pop %v1229
    %v1231 = vmul.f32 %v1217, 1.442695
    %v1232 = vpow.pop %v1231
    %v1233 = vmul.f32 %v1218, 1.442695
    %v1234 = vpow.pop %v1233
    %v1235 = vadd.f32 %v1220, 1.0
    %v1236 = vadd.f32 %v1222, 1.0
    %v1237 = vadd.f32 %v1224, 1.0
    %v1238 = vadd.f32 %v1226, 1.0
    %v1239 = vadd.f32 %v1228, 1.0
    %v1240 = vadd.f32 %v1230, 1.0
    %v1241 = vadd.f32 %v1232, 1.0
    %v1242 = vadd.f32 %v1234, 1.0
    %v1243 = vrcp.pop %v1235
    %v1244 = vmul.f32 %v1235, %v1243
    %v1245 = vsub.f32 1.0, %v1244
    %v1246 = vmul.f32 %v1243, %v1245
    %v1247 = vadd.f32 %v1243, %v1246
    %vm1248 = vweird.f32 %v1235
    %vm1249 = vweird.f32 %v1243
    %vm1250 = vmor %vm1248, %vm1249
    %v1251 = vsel %vm1250, %v1243, %v1247
    %v1252 = vand.u32 2147483647, %v1235
    %vm1253 = vcmp.eq.f32.partialorder %v1252, 8.507059e+37
    %v1254 = vand.u32 %v1235, 2147483648
    %v1255 = vor.u32 1.1754944e-38, %v1254
    %v1256 = vsel %vm1253, %v1255, %v1251
    %v1257 = vmul.f32 1.0, %v1256
    %v1258 = vrcp.pop %v1236
    %v1259 = vmul.f32 %v1236, %v1258
    %v1260 = vsub.f32 1.0, %v1259
    %v1261 = vmul.f32 %v1258, %v1260
    %v1262 = vadd.f32 %v1258, %v1261
    %vm1263 = vweird.f32 %v1236
    %vm1264 = vweird.f32 %v1258
    %vm1265 = vmor %vm1263, %vm1264
    %v1266 = vsel %vm1265, %v1258, %v1262
    %v1267 = vand.u32 2147483647, %v1236
    %vm1268 = vcmp.eq.f32.partialorder %v1267, 8.507059e+37
    %v1269 = vand.u32 %v1236, 2147483648
    %v1270 = vor.u32 1.1754944e-38, %v1269
    %v1271 = vsel %vm1268, %v1270, %v1266
    %v1272 = vmul.f32 1.0, %v1271
    %v1273 = vrcp.pop %v1237
    %v1274 = vmul.f32 %v1237, %v1273
    %v1275 = vsub.f32 1.0, %v1274
    %v1276 = vmul.f32 %v1273, %v1275
    %v1277 = vadd.f32 %v1273, %v1276
    %vm1278 = vweird.f32 %v1237
    %vm1279 = vweird.f32 %v1273
    %vm1280 = vmor %vm1278, %vm1279
    %v1281 = vsel %vm1280, %v1273, %v1277
    %v1282 = vand.u32 2147483647, %v1237
    %vm1283 = vcmp.eq.f32.partialorder %v1282, 8.507059e+37
    %v1284 = vand.u32 %v1237, 2147483648
    %v1285 = vor.u32 1.1754944e-38, %v1284
    %v1286 = vsel %vm1283, %v1285, %v1281
    %v1287 = vmul.f32 1.0, %v1286
    %v1288 = vrcp.pop %v1238
    %v1289 = vmul.f32 %v1238, %v1288
    %v1290 = vsub.f32 1.0, %v1289
    %v1291 = vmul.f32 %v1288, %v1290
    %v1292 = vadd.f32 %v1288, %v1291
    %vm1293 = vweird.f32 %v1238
    %vm1294 = vweird.f32 %v1288
    %vm1295 = vmor %vm1293, %vm1294
    %v1296 = vsel %vm1295, %v1288, %v1292
    %v1297 = vand.u32 2147483647, %v1238
    %vm1298 = vcmp.eq.f32.partialorder %v1297, 8.507059e+37
    %v1299 = vand.u32 %v1238, 2147483648
    %v1300 = vor.u32 1.1754944e-38, %v1299
    %v1301 = vsel %vm1298, %v1300, %v1296
    %v1302 = vmul.f32 1.0, %v1301
    %v1303 = vrcp.pop %v1239
    %v1304 = vmul.f32 %v1239, %v1303
    %v1305 = vsub.f32 1.0, %v1304
    %v1306 = vmul.f32 %v1303, %v1305
    %v1307 = vadd.f32 %v1303, %v1306
    %vm1308 = vweird.f32 %v1239
    %vm1309 = vweird.f32 %v1303
    %vm1310 = vmor %vm1308, %vm1309
    %v1311 = vsel %vm1310, %v1303, %v1307
    %v1312 = vand.u32 2147483647, %v1239
    %vm1313 = vcmp.eq.f32.partialorder %v1312, 8.507059e+37
    %v1314 = vand.u32 %v1239, 2147483648
    %v1315 = vor.u32 1.1754944e-38, %v1314
    %v1316 = vsel %vm1313, %v1315, %v1311
    %v1317 = vmul.f32 1.0, %v1316
    %v1318 = vrcp.pop %v1240
    %v1319 = vmul.f32 %v1240, %v1318
    %v1320 = vsub.f32 1.0, %v1319
    %v1321 = vmul.f32 %v1318, %v1320
    %v1322 = vadd.f32 %v1318, %v1321
    %vm1323 = vweird.f32 %v1240
    %vm1324 = vweird.f32 %v1318
    %vm1325 = vmor %vm1323, %vm1324
    %v1326 = vsel %vm1325, %v1318, %v1322
    %v1327 = vand.u32 2147483647, %v1240
    %vm1328 = vcmp.eq.f32.partialorder %v1327, 8.507059e+37
    %v1329 = vand.u32 %v1240, 2147483648
    %v1330 = vor.u32 1.1754944e-38, %v1329
    %v1331 = vsel %vm1328, %v1330, %v1326
    %v1332 = vmul.f32 1.0, %v1331
    %v1333 = vrcp.pop %v1241
    %v1334 = vmul.f32 %v1241, %v1333
    %v1335 = vsub.f32 1.0, %v1334
    %v1336 = vmul.f32 %v1333, %v1335
    %v1337 = vadd.f32 %v1333, %v1336
    %vm1338 = vweird.f32 %v1241
    %vm1339 = vweird.f32 %v1333
    %vm1340 = vmor %vm1338, %vm1339
    %v1341 = vsel %vm1340, %v1333, %v1337
    %v1342 = vand.u32 2147483647, %v1241
    %vm1343 = vcmp.eq.f32.partialorder %v1342, 8.507059e+37
    %v1344 = vand.u32 %v1241, 2147483648
    %v1345 = vor.u32 1.1754944e-38, %v1344
    %v1346 = vsel %vm1343, %v1345, %v1341
    %v1347 = vmul.f32 1.0, %v1346
    %v1348 = vrcp.pop %v1242
    %v1349 = vmul.f32 %v1242, %v1348
    %v1350 = vsub.f32 1.0, %v1349
    %v1351 = vmul.f32 %v1348, %v1350
    %v1352 = vadd.f32 %v1348, %v1351
    %vm1353 = vweird.f32 %v1242
    %vm1354 = vweird.f32 %v1348
    %vm1355 = vmor %vm1353, %vm1354
    %v1356 = vsel %vm1355, %v1348, %v1352
    %v1357 = vand.u32 2147483647, %v1242
    %vm1358 = vcmp.eq.f32.partialorder %v1357, 8.507059e+37
    %v1359 = vand.u32 %v1242, 2147483648
    %v1360 = vor.u32 1.1754944e-38, %v1359
    %v1361 = vsel %vm1358, %v1360, %v1356
    %v1362 = vmul.f32 1.0, %v1361
    %v1363 = vmul.f32 %v1188, %v1257
    %v1364 = vmul.f32 %v1191, %v1272
    %v1365 = vmul.f32 %v1194, %v1287
    %v1366 = vmul.f32 %v1197, %v1302
    %v1367 = vmul.f32 %v1200, %v1317
    %v1368 = vmul.f32 %v1203, %v1332
    %v1369 = vmul.f32 %v1206, %v1347
    %v1370 = vmul.f32 %v1209, %v1362
    %v1371 = vld [vmem:[%s31] sm:$0xff]
    %v1372 = vld [vmem:[%s31 + $0x8] sm:$0xff]
    %v1373 = vld [vmem:[%s31 + $0x10] sm:$0xff]
    %v1374 = vld [vmem:[%s31 + $0x18] sm:$0xff]
    %v1375 = vld [vmem:[%s31 + $0x20] sm:$0xff]
    %v1376 = vld [vmem:[%s31 + $0x28] sm:$0xff]
    %v1377 = vld [vmem:[%s31 + $0x30] sm:$0xff]
    %v1378 = vld [vmem:[%s31 + $0x38] sm:$0xff]
    %v1379 = vld [vmem:[%s31 + $0x40] sm:$0xff]
    %v1380 = vld [vmem:[%s31 + $0x48] sm:$0xff]
    %v1381 = vld [vmem:[%s31 + $0x50] sm:$0xff]
    %v1382 = vld [vmem:[%s31 + $0x58] sm:$0xff]
    %v1383 = vld [vmem:[%s31 + $0x60] sm:$0xff]
    %v1384 = vld [vmem:[%s31 + $0x68] sm:$0xff]
    %v1385 = vld [vmem:[%s31 + $0x70] sm:$0xff]
    %v1386 = vld [vmem:[%s31 + $0x78] sm:$0xff]
    %v1387 = vld [vmem:[%s33] sm:$0x1]
    %v1389 = vperm.slane %v1387, 0
    %1391 = vmatpush.msra.mxu0 %v1386
    %1392 = vmatpush.msra.mxu0 %v1385
    %1393 = vmatpush.msra.mxu0 %v1384
    %1394 = vmatpush.msra.mxu0 %v1383
    %1395 = vmatpush.msra.mxu0 %v1382
    %1396 = vmatpush.msra.mxu0 %v1381
    %1397 = vmatpush.msra.mxu0 %v1380
    %1398 = vmatpush.msra.mxu0 %v1379
    %1399 = vmatpush.msra.mxu0 %v1378
    %1400 = vmatpush.msra.mxu0 %v1377
    %1401 = vmatpush.msra.mxu0 %v1376
    %1402 = vmatpush.msra.mxu0 %v1375
    %1403 = vmatpush.msra.mxu0 %v1374
    %1404 = vmatpush.msra.mxu0 %v1373
    %1405 = vmatpush.msra.mxu0 %v1372
    %1406 = vmatpush.msra.mxu0 %v1371
    %1407 = vmatmul.f32.gmra.mxu0 %v1363
    %v1408 = vpop.f32.mrf.mxu0
    %v1409 = vadd.f32 %v1389, %v1408
    %1410 = vmatmul.f32.gmra.mxu0 %v1364
    %v1411 = vpop.f32.mrf.mxu0
    %v1412 = vadd.f32 %v1389, %v1411
    %1413 = vmatmul.f32.gmra.mxu0 %v1365
    %v1414 = vpop.f32.mrf.mxu0
    %v1415 = vadd.f32 %v1389, %v1414
    %1416 = vmatmul.f32.gmra.mxu0 %v1366
    %v1417 = vpop.f32.mrf.mxu0
    %v1418 = vadd.f32 %v1389, %v1417
    %1419 = vmatmul.f32.gmra.mxu0 %v1367
    %v1420 = vpop.f32.mrf.mxu0
    %v1421 = vadd.f32 %v1389, %v1420
    %1422 = vmatmul.f32.gmra.mxu0 %v1368
    %v1423 = vpop.f32.mrf.mxu0
    %v1424 = vadd.f32 %v1389, %v1423
    %1425 = vmatmul.f32.gmra.mxu0 %v1369
    %v1426 = vpop.f32.mrf.mxu0
    %v1427 = vadd.f32 %v1389, %v1426
    %1428 = vmatmul.f32.gmra.mxu0 %v1370
    %v1429 = vpop.f32.mrf.mxu0
    %v1430 = vadd.f32 %v1389, %v1429
    %1431 = vdwg.mxu0
    %1433 = vset.pattern.permute.xlu0 0
    %1434 = vperm.xlu0 %1433, %v1409
    %v1435 = vpop.permute.xlu0 %1434
    %1438 = vset.pattern.permute.xlu0 0
    %1439 = vperm.xlu0 %1438, %v1412
    %v1440 = vpop.permute.xlu0 %1439
    %1443 = vset.pattern.permute.xlu0 0
    %1444 = vperm.xlu0 %1443, %v1415
    %v1445 = vpop.permute.xlu0 %1444
    %1448 = vset.pattern.permute.xlu0 0
    %1449 = vperm.xlu0 %1448, %v1418
    %v1450 = vpop.permute.xlu0 %1449
    %1453 = vset.pattern.permute.xlu0 0
    %1454 = vperm.xlu0 %1453, %v1421
    %v1455 = vpop.permute.xlu0 %1454
    %1458 = vset.pattern.permute.xlu0 0
    %1459 = vperm.xlu0 %1458, %v1424
    %v1460 = vpop.permute.xlu0 %1459
    %1463 = vset.pattern.permute.xlu0 0
    %1464 = vperm.xlu0 %1463, %v1427
    %v1465 = vpop.permute.xlu0 %1464
    %1468 = vset.pattern.permute.xlu0 0
    %1469 = vperm.xlu0 %1468, %v1430
    %v1470 = vpop.permute.xlu0 %1469
    %v1472 = vmul.f32 %v1435, %v135
    %v1473 = vmul.f32 %v1440, %v136
    %v1474 = vmul.f32 %v1445, %v137
    %v1475 = vmul.f32 %v1450, %v138
    %v1476 = vmul.f32 %v1455, %v139
    %v1477 = vmul.f32 %v1460, %v140
    %v1478 = vmul.f32 %v1465, %v141
    %v1479 = vmul.f32 %v1470, %v142
    %vm1480 = vcmask 523264
    %v1482 = vsel %vm1480, %v143, 0
    %1484 = vmatpush.msra.mxu0 0.0
    %1485 = vmatpush.msra.mxu0 0.0
    %1486 = vmatpush.msra.mxu0 0.0
    %1487 = vmatpush.msra.mxu0 0.0
    %1488 = vmatpush.msra.mxu0 0.0
    %1489 = vmatpush.msra.mxu0 0.0
    %1490 = vmatpush.msra.mxu0 0.0
    %1491 = vmatpush.msra.mxu0 0.0
    %1492 = vmatpush.msra.mxu0 %v1479
    %1493 = vmatpush.msra.mxu0 %v1478
    %1494 = vmatpush.msra.mxu0 %v1477
    %1495 = vmatpush.msra.mxu0 %v1476
    %1496 = vmatpush.msra.mxu0 %v1475
    %1497 = vmatpush.msra.mxu0 %v1474
    %1498 = vmatpush.msra.mxu0 %v1473
    %1499 = vmatpush.msra.mxu0 %v1472
    %1500 = vmatmul.f32.gmra.mxu0 %v1482
    %v1501 = vpop.f32.mrf.mxu0
    %v1502 = vadd.f32 %v126, %v1501
    %1503 = vdwg.mxu0
    %v1504 = vmax.f32 %v1502, -1e+09
    %v1505 = vmin.f32 %v1504, 1e+09
    %v1506 = vsel %vm387, %v1505, -inf
    %1507 = vmax.xlane.f32.xlu0 %v1506
    %v1508 = vpop.xlane.xlu0 %1507
    %v1509 = vsub.f32 %v1505, %v1508
    %v1510 = vmul.f32 %v1509, 1.442695
    %v1511 = vpow.pop %v1510
    %v1512 = vsel %vm387, %v1511, 0.0
    %1513 = vadd.xlane.f32.xlu0 %v1512
    %v1514 = vpop.xlane.xlu0 %1513
    %v1515 = vrcp.pop %v1514
    %v1516 = vmul.f32 %v1511, %v1515
    %vm1517 = vcmp.ne.f32.partialorder %v1516, %v1516
    %v1518 = vsel %vm1517, 0.0, %v1516
    %v1520 = vsel %vm387, %v1518, 0
    %1522 = vmatpush.msra.mxu0 0.0
    %1523 = vmatpush.msra.mxu0 0.0
    %1524 = vmatpush.msra.mxu0 0.0
    %1525 = vmatpush.msra.mxu0 0.0
    %1526 = vmatpush.msra.mxu0 0.0
    %1527 = vmatpush.msra.mxu0 0.0
    %1528 = vmatpush.msra.mxu0 0.0
    %1529 = vmatpush.msra.mxu0 0.0
    %1530 = vmatpush.msra.mxu0 0.0
    %1531 = vmatpush.msra.mxu0 0.0
    %1532 = vmatpush.msra.mxu0 0.0
    %1533 = vmatpush.msra.mxu0 0.0
    %1534 = vmatpush.msra.mxu0 0.0
    %1535 = vmatpush.msra.mxu0 0.0
    %1536 = vmatpush.msra.mxu0 0.0
    %1537 = vmatpush.msra.mxu0 %v218
    %1538 = vmatmul.f32.gmra.mxu0 %v1520
    %v1539 = vpop.f32.mrf.mxu0
    %v1540 = vadd.f32 0.0, %v1539
    %1541 = vdwg.mxu0
    %v1542 = vsel %vm387, %v1518, 0.0
    %1543 = vadd.xlane.f32.xlu0 %v1542
    %v1544 = vpop.xlane.xlu0 %1543
    %1545 = vmatpush.msra.mxu0 0.0
    %1546 = vmatpush.msra.mxu0 0.0
    %1547 = vmatpush.msra.mxu0 0.0
    %1548 = vmatpush.msra.mxu0 0.0
    %1549 = vmatpush.msra.mxu0 0.0
    %1550 = vmatpush.msra.mxu0 0.0
    %1551 = vmatpush.msra.mxu0 0.0
    %1552 = vmatpush.msra.mxu0 0.0
    %1553 = vmatpush.msra.mxu0 0.0
    %1554 = vmatpush.msra.mxu0 0.0
    %1555 = vmatpush.msra.mxu0 0.0
    %1556 = vmatpush.msra.mxu0 0.0
    %1557 = vmatpush.msra.mxu0 0.0
    %1558 = vmatpush.msra.mxu0 0.0
    %1559 = vmatpush.msra.mxu0 0.0
    %1560 = vmatpush.msra.mxu0 %v125
    %1561 = vmatmul.f32.gmra.mxu0 %v1520
    %v1562 = vpop.f32.mrf.mxu0
    %v1563 = vadd.f32 0.0, %v1562
    %1564 = vdwg.mxu0
    %v1565 = vmul.f32 %v125, %v1544
    %v1566 = vsub.f32 %v1565, %v1563
    %1568 = vset.pattern.permute.xlu0 0
    %1569 = vperm.xlu0 %1568, %v386
    %v1570 = vpop.permute.xlu0 %1569
    %v1572 = vmul.f32 %v1570, %v1566
    %v1573 = vmul.f32 %v1572, 0.25
    %v1574 = vadd.f32 %v125, %v1573
    %1575 = vset.pattern.permute.xlu0 1
    %1576 = vperm.xlu0 %1575, %v1409
    %v1577 = vpop.permute.xlu0 %1576
    %1579 = vset.pattern.permute.xlu0 1
    %1580 = vperm.xlu0 %1579, %v1412
    %v1581 = vpop.permute.xlu0 %1580
    %1583 = vset.pattern.permute.xlu0 1
    %1584 = vperm.xlu0 %1583, %v1415
    %v1585 = vpop.permute.xlu0 %1584
    %1587 = vset.pattern.permute.xlu0 1
    %1588 = vperm.xlu0 %1587, %v1418
    %v1589 = vpop.permute.xlu0 %1588
    %1591 = vset.pattern.permute.xlu0 1
    %1592 = vperm.xlu0 %1591, %v1421
    %v1593 = vpop.permute.xlu0 %1592
    %1595 = vset.pattern.permute.xlu0 1
    %1596 = vperm.xlu0 %1595, %v1424
    %v1597 = vpop.permute.xlu0 %1596
    %1599 = vset.pattern.permute.xlu0 1
    %1600 = vperm.xlu0 %1599, %v1427
    %v1601 = vpop.permute.xlu0 %1600
    %1603 = vset.pattern.permute.xlu0 1
    %1604 = vperm.xlu0 %1603, %v1430
    %v1605 = vpop.permute.xlu0 %1604
    %v1607 = vmul.f32 %v1577, %v135
    %v1608 = vmul.f32 %v1581, %v136
    %v1609 = vmul.f32 %v1585, %v137
    %v1610 = vmul.f32 %v1589, %v138
    %v1611 = vmul.f32 %v1593, %v139
    %v1612 = vmul.f32 %v1597, %v140
    %v1613 = vmul.f32 %v1601, %v141
    %v1614 = vmul.f32 %v1605, %v142
    %1615 = vmatpush.msra.mxu0 0.0
    %1616 = vmatpush.msra.mxu0 0.0
    %1617 = vmatpush.msra.mxu0 0.0
    %1618 = vmatpush.msra.mxu0 0.0
    %1619 = vmatpush.msra.mxu0 0.0
    %1620 = vmatpush.msra.mxu0 0.0
    %1621 = vmatpush.msra.mxu0 0.0
    %1622 = vmatpush.msra.mxu0 0.0
    %1623 = vmatpush.msra.mxu0 %v1614
    %1624 = vmatpush.msra.mxu0 %v1613
    %1625 = vmatpush.msra.mxu0 %v1612
    %1626 = vmatpush.msra.mxu0 %v1611
    %1627 = vmatpush.msra.mxu0 %v1610
    %1628 = vmatpush.msra.mxu0 %v1609
    %1629 = vmatpush.msra.mxu0 %v1608
    %1630 = vmatpush.msra.mxu0 %v1607
    %1631 = vmatmul.f32.gmra.mxu0 %v1482
    %v1632 = vpop.f32.mrf.mxu0
    %v1633 = vadd.f32 %v126, %v1632
    %1634 = vdwg.mxu0
    %v1635 = vmax.f32 %v1633, -1e+09
    %v1636 = vmin.f32 %v1635, 1e+09
    %v1637 = vsel %vm387, %v1636, -inf
    %1638 = vmax.xlane.f32.xlu0 %v1637
    %v1639 = vpop.xlane.xlu0 %1638
    %v1640 = vsub.f32 %v1636, %v1639
    %v1641 = vmul.f32 %v1640, 1.442695
    %v1642 = vpow.pop %v1641
    %v1643 = vsel %vm387, %v1642, 0.0
    %1644 = vadd.xlane.f32.xlu0 %v1643
    %v1645 = vpop.xlane.xlu0 %1644
    %v1646 = vrcp.pop %v1645
    %v1647 = vmul.f32 %v1642, %v1646
    %vm1648 = vcmp.ne.f32.partialorder %v1647, %v1647
    %v1649 = vsel %vm1648, 0.0, %v1647
    %1650 = vrot.lane.b32.xlu0 %v218, 120
    %v1651 = vpop.permute.xlu0 %1650
    %v1654 = vsel %vm387, %v1649, 0
    %1656 = vmatpush.msra.mxu0 0.0
    %1657 = vmatpush.msra.mxu0 0.0
    %1658 = vmatpush.msra.mxu0 0.0
    %1659 = vmatpush.msra.mxu0 0.0
    %1660 = vmatpush.msra.mxu0 0.0
    %1661 = vmatpush.msra.mxu0 0.0
    %1662 = vmatpush.msra.mxu0 0.0
    %1663 = vmatpush.msra.mxu0 0.0
    %1664 = vmatpush.msra.mxu0 0.0
    %1665 = vmatpush.msra.mxu0 0.0
    %1666 = vmatpush.msra.mxu0 0.0
    %1667 = vmatpush.msra.mxu0 0.0
    %1668 = vmatpush.msra.mxu0 0.0
    %1669 = vmatpush.msra.mxu0 0.0
    %1670 = vmatpush.msra.mxu0 0.0
    %1671 = vmatpush.msra.mxu0 %v1651
    %1672 = vmatmul.f32.gmra.mxu0 %v1654
    %v1673 = vpop.f32.mrf.mxu0
    %v1674 = vadd.f32 0.0, %v1673
    %1675 = vdwg.mxu0
    %v1676 = vsel %vm387, %v1649, 0.0
    %1677 = vadd.xlane.f32.xlu0 %v1676
    %v1678 = vpop.xlane.xlu0 %1677
    %1679 = vmatpush.msra.mxu0 0.0
    %1680 = vmatpush.msra.mxu0 0.0
    %1681 = vmatpush.msra.mxu0 0.0
    %1682 = vmatpush.msra.mxu0 0.0
    %1683 = vmatpush.msra.mxu0 0.0
    %1684 = vmatpush.msra.mxu0 0.0
    %1685 = vmatpush.msra.mxu0 0.0
    %1686 = vmatpush.msra.mxu0 0.0
    %1687 = vmatpush.msra.mxu0 0.0
    %1688 = vmatpush.msra.mxu0 0.0
    %1689 = vmatpush.msra.mxu0 0.0
    %1690 = vmatpush.msra.mxu0 0.0
    %1691 = vmatpush.msra.mxu0 0.0
    %1692 = vmatpush.msra.mxu0 0.0
    %1693 = vmatpush.msra.mxu0 0.0
    %1694 = vmatpush.msra.mxu0 %v125
    %1695 = vmatmul.f32.gmra.mxu0 %v1654
    %v1696 = vpop.f32.mrf.mxu0
    %v1697 = vadd.f32 0.0, %v1696
    %1698 = vdwg.mxu0
    %v1699 = vmul.f32 %v125, %v1678
    %v1700 = vsub.f32 %v1699, %v1697
    %1701 = vset.pattern.permute.xlu0 1
    %1702 = vperm.xlu0 %1701, %v386
    %v1703 = vpop.permute.xlu0 %1702
    %v1705 = vmul.f32 %v1703, %v1700
    %v1706 = vmul.f32 %v1705, 0.25
    %v1707 = vadd.f32 %v1574, %v1706
    %1708 = vset.pattern.permute.xlu0 2
    %1709 = vperm.xlu0 %1708, %v1409
    %v1710 = vpop.permute.xlu0 %1709
    %1712 = vset.pattern.permute.xlu0 2
    %1713 = vperm.xlu0 %1712, %v1412
    %v1714 = vpop.permute.xlu0 %1713
    %1716 = vset.pattern.permute.xlu0 2
    %1717 = vperm.xlu0 %1716, %v1415
    %v1718 = vpop.permute.xlu0 %1717
    %1720 = vset.pattern.permute.xlu0 2
    %1721 = vperm.xlu0 %1720, %v1418
    %v1722 = vpop.permute.xlu0 %1721
    %1724 = vset.pattern.permute.xlu0 2
    %1725 = vperm.xlu0 %1724, %v1421
    %v1726 = vpop.permute.xlu0 %1725
    %1728 = vset.pattern.permute.xlu0 2
    %1729 = vperm.xlu0 %1728, %v1424
    %v1730 = vpop.permute.xlu0 %1729
    %1732 = vset.pattern.permute.xlu0 2
    %1733 = vperm.xlu0 %1732, %v1427
    %v1734 = vpop.permute.xlu0 %1733
    %1736 = vset.pattern.permute.xlu0 2
    %1737 = vperm.xlu0 %1736, %v1430
    %v1738 = vpop.permute.xlu0 %1737
    %v1740 = vmul.f32 %v1710, %v135
    %v1741 = vmul.f32 %v1714, %v136
    %v1742 = vmul.f32 %v1718, %v137
    %v1743 = vmul.f32 %v1722, %v138
    %v1744 = vmul.f32 %v1726, %v139
    %v1745 = vmul.f32 %v1730, %v140
    %v1746 = vmul.f32 %v1734, %v141
    %v1747 = vmul.f32 %v1738, %v142
    %1748 = vmatpush.msra.mxu0 0.0
    %1749 = vmatpush.msra.mxu0 0.0
    %1750 = vmatpush.msra.mxu0 0.0
    %1751 = vmatpush.msra.mxu0 0.0
    %1752 = vmatpush.msra.mxu0 0.0
    %1753 = vmatpush.msra.mxu0 0.0
    %1754 = vmatpush.msra.mxu0 0.0
    %1755 = vmatpush.msra.mxu0 0.0
    %1756 = vmatpush.msra.mxu0 %v1747
    %1757 = vmatpush.msra.mxu0 %v1746
    %1758 = vmatpush.msra.mxu0 %v1745
    %1759 = vmatpush.msra.mxu0 %v1744
    %1760 = vmatpush.msra.mxu0 %v1743
    %1761 = vmatpush.msra.mxu0 %v1742
    %1762 = vmatpush.msra.mxu0 %v1741
    %1763 = vmatpush.msra.mxu0 %v1740
    %1764 = vmatmul.f32.gmra.mxu0 %v1482
    %v1765 = vpop.f32.mrf.mxu0
    %v1766 = vadd.f32 %v126, %v1765
    %1767 = vdwg.mxu0
    %v1768 = vmax.f32 %v1766, -1e+09
    %v1769 = vmin.f32 %v1768, 1e+09
    %v1770 = vsel %vm387, %v1769, -inf
    %1771 = vmax.xlane.f32.xlu0 %v1770
    %v1772 = vpop.xlane.xlu0 %1771
    %v1773 = vsub.f32 %v1769, %v1772
    %v1774 = vmul.f32 %v1773, 1.442695
    %v1775 = vpow.pop %v1774
    %v1776 = vsel %vm387, %v1775, 0.0
    %1777 = vadd.xlane.f32.xlu0 %v1776
    %v1778 = vpop.xlane.xlu0 %1777
    %v1779 = vrcp.pop %v1778
    %v1780 = vmul.f32 %v1775, %v1779
    %vm1781 = vcmp.ne.f32.partialorder %v1780, %v1780
    %v1782 = vsel %vm1781, 0.0, %v1780
    %1783 = vrot.lane.b32.xlu0 %v218, 112
    %v1784 = vpop.permute.xlu0 %1783
    %v1787 = vsel %vm387, %v1782, 0
    %1789 = vmatpush.msra.mxu0 0.0
    %1790 = vmatpush.msra.mxu0 0.0
    %1791 = vmatpush.msra.mxu0 0.0
    %1792 = vmatpush.msra.mxu0 0.0
    %1793 = vmatpush.msra.mxu0 0.0
    %1794 = vmatpush.msra.mxu0 0.0
    %1795 = vmatpush.msra.mxu0 0.0
    %1796 = vmatpush.msra.mxu0 0.0
    %1797 = vmatpush.msra.mxu0 0.0
    %1798 = vmatpush.msra.mxu0 0.0
    %1799 = vmatpush.msra.mxu0 0.0
    %1800 = vmatpush.msra.mxu0 0.0
    %1801 = vmatpush.msra.mxu0 0.0
    %1802 = vmatpush.msra.mxu0 0.0
    %1803 = vmatpush.msra.mxu0 0.0
    %1804 = vmatpush.msra.mxu0 %v1784
    %1805 = vmatmul.f32.gmra.mxu0 %v1787
    %v1806 = vpop.f32.mrf.mxu0
    %v1807 = vadd.f32 0.0, %v1806
    %1808 = vdwg.mxu0
    %v1809 = vsel %vm387, %v1782, 0.0
    %1810 = vadd.xlane.f32.xlu0 %v1809
    %v1811 = vpop.xlane.xlu0 %1810
    %1812 = vmatpush.msra.mxu0 0.0
    %1813 = vmatpush.msra.mxu0 0.0
    %1814 = vmatpush.msra.mxu0 0.0
    %1815 = vmatpush.msra.mxu0 0.0
    %1816 = vmatpush.msra.mxu0 0.0
    %1817 = vmatpush.msra.mxu0 0.0
    %1818 = vmatpush.msra.mxu0 0.0
    %1819 = vmatpush.msra.mxu0 0.0
    %1820 = vmatpush.msra.mxu0 0.0
    %1821 = vmatpush.msra.mxu0 0.0
    %1822 = vmatpush.msra.mxu0 0.0
    %1823 = vmatpush.msra.mxu0 0.0
    %1824 = vmatpush.msra.mxu0 0.0
    %1825 = vmatpush.msra.mxu0 0.0
    %1826 = vmatpush.msra.mxu0 0.0
    %1827 = vmatpush.msra.mxu0 %v125
    %1828 = vmatmul.f32.gmra.mxu0 %v1787
    %v1829 = vpop.f32.mrf.mxu0
    %v1830 = vadd.f32 0.0, %v1829
    %1831 = vdwg.mxu0
    %v1832 = vmul.f32 %v125, %v1811
    %v1833 = vsub.f32 %v1832, %v1830
    %1834 = vset.pattern.permute.xlu0 2
    %1835 = vperm.xlu0 %1834, %v386
    %v1836 = vpop.permute.xlu0 %1835
    %v1838 = vmul.f32 %v1836, %v1833
    %v1839 = vmul.f32 %v1838, 0.25
    %v1840 = vadd.f32 %v1707, %v1839
    %1841 = vset.pattern.permute.xlu0 3
    %1842 = vperm.xlu0 %1841, %v1409
    %v1843 = vpop.permute.xlu0 %1842
    %1845 = vset.pattern.permute.xlu0 3
    %1846 = vperm.xlu0 %1845, %v1412
    %v1847 = vpop.permute.xlu0 %1846
    %1849 = vset.pattern.permute.xlu0 3
    %1850 = vperm.xlu0 %1849, %v1415
    %v1851 = vpop.permute.xlu0 %1850
    %1853 = vset.pattern.permute.xlu0 3
    %1854 = vperm.xlu0 %1853, %v1418
    %v1855 = vpop.permute.xlu0 %1854
    %1857 = vset.pattern.permute.xlu0 3
    %1858 = vperm.xlu0 %1857, %v1421
    %v1859 = vpop.permute.xlu0 %1858
    %1861 = vset.pattern.permute.xlu0 3
    %1862 = vperm.xlu0 %1861, %v1424
    %v1863 = vpop.permute.xlu0 %1862
    %1865 = vset.pattern.permute.xlu0 3
    %1866 = vperm.xlu0 %1865, %v1427
    %v1867 = vpop.permute.xlu0 %1866
    %1869 = vset.pattern.permute.xlu0 3
    %1870 = vperm.xlu0 %1869, %v1430
    %v1871 = vpop.permute.xlu0 %1870
    %v1873 = vmul.f32 %v1843, %v135
    %v1874 = vmul.f32 %v1847, %v136
    %v1875 = vmul.f32 %v1851, %v137
    %v1876 = vmul.f32 %v1855, %v138
    %v1877 = vmul.f32 %v1859, %v139
    %v1878 = vmul.f32 %v1863, %v140
    %v1879 = vmul.f32 %v1867, %v141
    %v1880 = vmul.f32 %v1871, %v142
    %1881 = vmatpush.msra.mxu0 0.0
    %1882 = vmatpush.msra.mxu0 0.0
    %1883 = vmatpush.msra.mxu0 0.0
    %1884 = vmatpush.msra.mxu0 0.0
    %1885 = vmatpush.msra.mxu0 0.0
    %1886 = vmatpush.msra.mxu0 0.0
    %1887 = vmatpush.msra.mxu0 0.0
    %1888 = vmatpush.msra.mxu0 0.0
    %1889 = vmatpush.msra.mxu0 %v1880
    %1890 = vmatpush.msra.mxu0 %v1879
    %1891 = vmatpush.msra.mxu0 %v1878
    %1892 = vmatpush.msra.mxu0 %v1877
    %1893 = vmatpush.msra.mxu0 %v1876
    %1894 = vmatpush.msra.mxu0 %v1875
    %1895 = vmatpush.msra.mxu0 %v1874
    %1896 = vmatpush.msra.mxu0 %v1873
    %1897 = vmatmul.f32.gmra.mxu0 %v1482
    %v1898 = vpop.f32.mrf.mxu0
    %v1899 = vadd.f32 %v126, %v1898
    %1900 = vdwg.mxu0
    %v1901 = vmax.f32 %v1899, -1e+09
    %v1902 = vmin.f32 %v1901, 1e+09
    %v1903 = vsel %vm387, %v1902, -inf
    %1904 = vmax.xlane.f32.xlu0 %v1903
    %v1905 = vpop.xlane.xlu0 %1904
    %v1906 = vsub.f32 %v1902, %v1905
    %v1907 = vmul.f32 %v1906, 1.442695
    %v1908 = vpow.pop %v1907
    %v1909 = vsel %vm387, %v1908, 0.0
    %1910 = vadd.xlane.f32.xlu0 %v1909
    %v1911 = vpop.xlane.xlu0 %1910
    %v1912 = vrcp.pop %v1911
    %v1913 = vmul.f32 %v1908, %v1912
    %vm1914 = vcmp.ne.f32.partialorder %v1913, %v1913
    %v1915 = vsel %vm1914, 0.0, %v1913
    %1916 = vrot.lane.b32.xlu0 %v218, 104
    %v1917 = vpop.permute.xlu0 %1916
    %v1920 = vsel %vm387, %v1915, 0
    %1922 = vmatpush.msra.mxu0 0.0
    %1923 = vmatpush.msra.mxu0 0.0
    %1924 = vmatpush.msra.mxu0 0.0
    %1925 = vmatpush.msra.mxu0 0.0
    %1926 = vmatpush.msra.mxu0 0.0
    %1927 = vmatpush.msra.mxu0 0.0
    %1928 = vmatpush.msra.mxu0 0.0
    %1929 = vmatpush.msra.mxu0 0.0
    %1930 = vmatpush.msra.mxu0 0.0
    %1931 = vmatpush.msra.mxu0 0.0
    %1932 = vmatpush.msra.mxu0 0.0
    %1933 = vmatpush.msra.mxu0 0.0
    %1934 = vmatpush.msra.mxu0 0.0
    %1935 = vmatpush.msra.mxu0 0.0
    %1936 = vmatpush.msra.mxu0 0.0
    %1937 = vmatpush.msra.mxu0 %v1917
    %1938 = vmatmul.f32.gmra.mxu0 %v1920
    %v1939 = vpop.f32.mrf.mxu0
    %v1940 = vadd.f32 0.0, %v1939
    %1941 = vdwg.mxu0
    %v1942 = vsel %vm387, %v1915, 0.0
    %1943 = vadd.xlane.f32.xlu0 %v1942
    %v1944 = vpop.xlane.xlu0 %1943
    %1945 = vmatpush.msra.mxu0 0.0
    %1946 = vmatpush.msra.mxu0 0.0
    %1947 = vmatpush.msra.mxu0 0.0
    %1948 = vmatpush.msra.mxu0 0.0
    %1949 = vmatpush.msra.mxu0 0.0
    %1950 = vmatpush.msra.mxu0 0.0
    %1951 = vmatpush.msra.mxu0 0.0
    %1952 = vmatpush.msra.mxu0 0.0
    %1953 = vmatpush.msra.mxu0 0.0
    %1954 = vmatpush.msra.mxu0 0.0
    %1955 = vmatpush.msra.mxu0 0.0
    %1956 = vmatpush.msra.mxu0 0.0
    %1957 = vmatpush.msra.mxu0 0.0
    %1958 = vmatpush.msra.mxu0 0.0
    %1959 = vmatpush.msra.mxu0 0.0
    %1960 = vmatpush.msra.mxu0 %v125
    %1961 = vmatmul.f32.gmra.mxu0 %v1920
    %v1962 = vpop.f32.mrf.mxu0
    %v1963 = vadd.f32 0.0, %v1962
    %1964 = vdwg.mxu0
    %v1965 = vmul.f32 %v125, %v1944
    %v1966 = vsub.f32 %v1965, %v1963
    %1967 = vset.pattern.permute.xlu0 3
    %1968 = vperm.xlu0 %1967, %v386
    %v1969 = vpop.permute.xlu0 %1968
    %v1971 = vmul.f32 %v1969, %v1966
    %v1972 = vmul.f32 %v1971, 0.25
    %v1973 = vadd.f32 %v1840, %v1972
    %1975 = vrot.lane.b32.xlu0 %v1674, 8
    %v1976 = vpop.permute.xlu0 %1975
    %1979 = vrot.lane.b32.xlu0 %v1807, 16
    %v1980 = vpop.permute.xlu0 %1979
    %1983 = vrot.lane.b32.xlu0 %v1940, 24
    %v1984 = vpop.permute.xlu0 %1983
    %v1986 = vsel %vm387, %v1540, %v1976
    %v1987 = vsel %vm822, %v1986, %v1980
    %vm1988 = vcmask 195584
    %v1989 = vsel %vm1988, %v1987, %v1984
    %v1990 = vld [vmem:[%s43] sm:$0xff]
    %v1991 = vld [vmem:[%s43 + $0x8] sm:$0xff]
    %v1992 = vld [vmem:[%s43 + $0x10] sm:$0xff]
    %v1993 = vld [vmem:[%s43 + $0x18] sm:$0xff]
    %v1994 = vld [vmem:[%s45] sm:$0x1]
    %v1996 = vperm.slane %v1994, 0
    %v1999 = vsel %vm148, %v1989, 0
    %2001 = vmatpush.msra.mxu0 0.0
    %2002 = vmatpush.msra.mxu0 0.0
    %2003 = vmatpush.msra.mxu0 0.0
    %2004 = vmatpush.msra.mxu0 0.0
    %2005 = vmatpush.msra.mxu0 0.0
    %2006 = vmatpush.msra.mxu0 0.0
    %2007 = vmatpush.msra.mxu0 0.0
    %2008 = vmatpush.msra.mxu0 0.0
    %2009 = vmatpush.msra.mxu0 0.0
    %2010 = vmatpush.msra.mxu0 0.0
    %2011 = vmatpush.msra.mxu0 0.0
    %2012 = vmatpush.msra.mxu0 0.0
    %2013 = vmatpush.msra.mxu0 %v1993
    %2014 = vmatpush.msra.mxu0 %v1992
    %2015 = vmatpush.msra.mxu0 %v1991
    %2016 = vmatpush.msra.mxu0 %v1990
    %2017 = vmatmul.f32.gmra.mxu0 %v1999
    %v2018 = vpop.f32.mrf.mxu0
    %v2019 = vadd.f32 %v1996, %v2018
    %2020 = vdwg.mxu0
    %v2021 = vadd.f32 %v124, %v2019
    %v2022 = vsel %vm148, %v2021, 0.0
    %2023 = vadd.xlane.f32.xlu0 %v2022
    %v2024 = vpop.xlane.xlu0 %2023
    %v2025 = vrcp.pop 32.0
    %v2026 = vmul.f32 32.0, %v2025
    %v2027 = vsub.f32 1.0, %v2026
    %v2028 = vmul.f32 %v2025, %v2027
    %v2029 = vadd.f32 %v2025, %v2028
    %vm2030 = vweird.f32 %v2025
    %v2031 = vsel %vm2030, %v2025, %v2029
    %v2032 = vmul.f32 %v2024, %v2031
    %v2033 = vsub.f32 %v2021, %v2032
    %v2034 = vmul.f32 %v2033, %v2033
    %v2035 = vsel %vm148, %v2034, 0.0
    %2036 = vadd.xlane.f32.xlu0 %v2035
    %v2037 = vpop.xlane.xlu0 %2036
    %v2038 = vmul.f32 %v2037, %v2031
    %v2039 = vadd.f32 %v2038, 1e-05
    %v2040 = vrsqrt.pop %v2039
    %v2041 = vmul.f32 %v2040, %v2039
    %v2042 = vmul.f32 %v2041, %v2040
    %v2043 = vmul.f32 0.5, %v2042
    %v2044 = vsub.f32 1.5, %v2043
    %v2045 = vmul.f32 %v2040, %v2044
    %vm2046 = vweird.f32 %v2039
    %vm2047 = vweird.f32 %v2040
    %vm2048 = vmor %vm2046, %vm2047
    %v2049 = vsel %vm2048, %v2040, %v2045
    %v2050 = vmul.f32 %v2033, %v2049
    %v2051 = vld [vmem:[%s47] sm:$0x1]
    %v2053 = vperm.slane %v2051, 0
    %v2055 = vmul.f32 %v2050, %v2053
    %v2056 = vld [vmem:[%s49] sm:$0x1]
    %v2058 = vperm.slane %v2056, 0
    %v2060 = vadd.f32 %v2055, %v2058
    %2061 = vst.msk [vmem:[#allocation3] sm:$0xff] %vm148, %v2060
    %2062 = vst.msk [vmem:[%s59] sm:$0xff] %vm534, %v1973
    // Predicated region
    $region114: #{tpu_custom_call.1} parent=1 // pred_check
      _
    $region115: #{tpu_custom_call.1} parent=1 // pred_check_branch
      %2064 = sbr.rel (0) target = $region117
    $region116: #{tpu_custom_call.1} parent=1 // pred_region
      %2066 = vsyncadd [#allocation4], 0
      %s2068 = sshll.u32 [#allocation3], 4
      %s2069 = int_to_ptr.vmem [resolvable:$true] %s2068
      %s2070 = sshll.u32 %s57, 4
      %s2071 = int_to_ptr.hbm [resolvable:$true] %s2070
      %2073 = dma.vmem_to_hbm [thread:$0]  %s2069, 128, %s2071, [#allocation4]
    $region117: #{tpu_custom_call.1} parent=1 // pred_fallthru
      _
    // Predicated region
    $region118: #{tpu_custom_call.1} parent=1 // pred_check
      _
    $region119: #{tpu_custom_call.1} parent=1 // pred_check_branch
      %2075 = sbr.rel (0) target = $region121
    $region120: #{tpu_custom_call.1} parent=1 // pred_region
      _
    $region121: #{tpu_custom_call.1} parent=1 // pred_fallthru
      _
    // Predicated region
    $region122: #{tpu_custom_call.1} parent=1 // pred_check
      _
    $region123: #{tpu_custom_call.1} parent=1 // pred_check_branch
      %2077 = sbr.rel (0) target = $region125
    $region124: #{tpu_custom_call.1} parent=1 // pred_region
      %2079 = dma.done [#allocation4], 128
    $region125: #{tpu_custom_call.1} parent=1 // pred_fallthru
      _
    // Predicated region
    $region126: #{tpu_custom_call.1} parent=1 // pred_check
      _
    $region127: #{tpu_custom_call.1} parent=1 // pred_check_branch
      %2081 = sbr.rel (0) target = $region129
    $region128: #{tpu_custom_call.1} parent=1 // pred_region
      _
    $region129: #{tpu_custom_call.1} parent=1 // pred_fallthru
      _
    %2082 = vsyncpa [#allocation4], 1

</llo_original>
